<compile_context>
chip_gen: v7x
topology: tpu7x:2x2x1
jax: 0.10.0
libtpu: 0.0.40
codegen_flags: <defaults>
</compile_context>

<pallas_src>
import functools

import jax
import jax.numpy as jnp
from jax.experimental import pallas as pl
from jax.experimental.pallas import tpu as pltpu


def _reverse_kl_kernel(logits_ref, targets_ref, colsum_ref, d_ref, *,
                       inv_temperature, vocab, tm):
    i = pl.program_id(1)            # inner ("arbitrary") row-tile axis

    @pl.when(i == 0)
    def _init():
        colsum_ref[...] = jnp.zeros_like(colsum_ref)

    # Stream tiles in the HBM dtype; upcast in-register for the transcendentals.
    x = logits_ref[...].astype(jnp.float32)                         # (TM, V)
    t = targets_ref[...].astype(jnp.float32) * inv_temperature      # (TM, V)

    x_max = jnp.max(x, axis=-1, keepdims=True)                      # (TM, 1)
    t_max = jnp.max(t, axis=-1, keepdims=True)                      # (TM, 1)
    ex = jnp.exp(x - x_max)                                         # (TM, V) EUP
    et = jnp.exp(t - t_max)                                         # (TM, V) EUP
    sum_ex = jnp.sum(ex, axis=-1, keepdims=True)                    # (TM, 1)
    sum_et = jnp.sum(et, axis=-1, keepdims=True)                    # (TM, 1)

    # softmax(logits); exact reciprocal is essentially free on a (TM, 1) tile.
    p = ex * pl.reciprocal(sum_ex, approx=False)                    # (TM, V)

    # d[row] = sum_k (log_softmax(x) - log_softmax(t))[row, k]
    #        = rowsum(x - t) - V*(x_max - t_max) + V*(log(sum_et) - log(sum_ex))
    # -> a single merged full-width cross-lane reduce instead of two.
    sum_diff = jnp.sum(x - t, axis=-1, keepdims=True)               # (TM, 1)
    d_col = (sum_diff
             - vocab * (x_max - t_max)
             + vocab * (jnp.log(sum_et) - jnp.log(sum_ex)))         # (TM, 1)

    # Per-core partial column sums of softmax(logits), resident across i.
    # TODO(synk): optionally offload this as a (1,TM)@(TM,V) matmul on the idle
    #             MXU once a bundle dump confirms the vex slot isn't the binder.
    colsum_ref[...] += jnp.sum(p, axis=0, keepdims=True)[None, :, :]  # (1,1,V)

    # Lane-major d: this tile's d values as a (1, TM) row slice of the output.
    d_ref[...] = d_col.reshape(1, tm)


_TM_CANDIDATES = (1024, 512, 256, 128)   # lane-aligned row tiles


def _vmem_capacity_bytes():
    """Per-core VMEM capacity for this generation (conservative fallback)."""
    try:
        return int(pltpu.get_tpu_info().vmem_capacity_bytes)
    except Exception:
        return 64 * 1024 * 1024          # v7x per-TC size: safe on every gen


def _round_up(a, m):
    return ((a + m - 1) // m) * m


def _choose_tm(n, v, vmem_capacity):
    """Largest lane-aligned row tile whose f32 working set fits this chip."""
    # ~6 live f32 (TM, V) temporaries capped at ~25% of VMEM capacity keeps
    # double-buffered input streaming + output blocks comfortably resident
    # (~16 MiB of temporaries on v7x, ~32 MiB on v5e/v6e).
    max_rows = max(8, (vmem_capacity // 4) // (6 * v * 4))
    for cand in _TM_CANDIDATES:
        if cand <= max_rows and n % cand == 0:
            return cand
    # TODO(synk): remainder-tile / padded-grid path when N has no lane-aligned
    #             divisor; for now fall back to a single full block.
    return n


def reverse_kl_div_loss(logits, targets, temperature=1.0, *, tm=None, cores=None):
    """ReverseKLDivLoss(return_scalar=True).forward(logits, targets, masks=None)."""
    # TODO(synk): masks path (torch.masked_select + mean over a dynamic-size
    #             selection) and the return_scalar=False path are not implemented.
    v = logits.shape[-1]
    x2 = logits.reshape(-1, v)
    t2 = targets.reshape(-1, targets.shape[-1])   # keep native dtype in HBM
    n = x2.shape[0]
    # The original module's (N, V) * (N,) broadcast only type-checks when N == V.
    assert n == v, "ReverseKLDivLoss as written requires batch*seq == vocab"
    assert t2.shape == (n, v)

    cap = _vmem_capacity_bytes()
    if tm is None:
        tm = _choose_tm(n, v, cap)
    assert n % tm == 0, "row tile must evenly divide N"
    tiles = n // tm
    if cores is None:
        # Per-core partial accumulators: enables the dual-TensorCore split on
        # v7x; costs nothing on single-core chips.
        cores = 2 if (tiles >= 2 and tiles % 2 == 0) else 1
    assert tiles % cores == 0
    g = tiles // cores
    # TODO(synk): on v7x mark the leading axis pltpu.CORE_PARALLEL (or use
    #             pl.core_map over a 2-core mesh) for the true 2-TC split.

    isx = jnp.dtype(x2.dtype).itemsize
    ist = jnp.dtype(t2.dtype).itemsize
    vmem_need = (2 * tm * v * (isx + ist)                        # dbl-buffered inputs
                 + 6 * tm * v * 4                                # live f32 temps
                 + 2 * _round_up(1, 8) * _round_up(v, 128) * 4   # colsum out block
                 + 2 * _round_up(1, 8) * _round_up(tm, 128) * 4  # d out block
                 + (1 << 20))                                    # misc headroom
    # Leave >= 25% of this generation's VMEM as headroom (v7x has only 64 MiB).
    vmem_limit = int(min(max(vmem_need, 32 * 1024 * 1024), (3 * cap) // 4))

    kernel = functools.partial(
        _reverse_kl_kernel,
        inv_temperature=1.0 / float(temperature),
        vocab=float(v),
        tm=tm,
    )
    colsum, d = pl.pallas_call(
        kernel,
        out_shape=(
            jax.ShapeDtypeStruct((cores, 1, v), jnp.float32),  # per-core colsums
            jax.ShapeDtypeStruct((1, n), jnp.float32),         # lane-major d
        ),
        grid_spec=pltpu.PrefetchScalarGridSpec(
            num_scalar_prefetch=0,
            grid=(cores, g),
            in_specs=[
                pl.BlockSpec((tm, v), lambda c, i: (c * g + i, 0)),
                pl.BlockSpec((tm, v), lambda c, i: (c * g + i, 0)),
            ],
            out_specs=[
                pl.BlockSpec((1, 1, v), lambda c, i: (c, 0, 0)),
                pl.BlockSpec((1, tm), lambda c, i: (0, c * g + i)),
            ],
        ),
        compiler_params=pltpu.CompilerParams(
            dimension_semantics=("parallel", "arbitrary"),
            vmem_limit_bytes=vmem_limit,
        ),
        cost_estimate=pl.CostEstimate(
            flops=int(10 * n * v),
            transcendentals=int(2 * n * v + 4 * n),
            bytes_accessed=int(n * v * (isx + ist) + (cores * v + n) * 4),
        ),
    )(x2, t2)

    # Tiny O(V) combine in plain JAX:
    #   mean = sum_j (sum_c colsum[c, j]) * d[j] / (N * V)
    total = jnp.sum(jnp.sum(colsum, axis=0) * d)
    return (total / float(n * v)).astype(logits.dtype)


def _reference(logits, targets, temperature=1.0):
    """Pure-JAX re-implementation of the PyTorch forward, for validation."""
    v = logits.shape[-1]
    x2 = logits.reshape(-1, v).astype(jnp.float32)
    t2 = targets.reshape(-1, targets.shape[-1]).astype(jnp.float32)
    p = jax.nn.softmax(x2, axis=-1)
    d = jnp.sum(
        jax.nn.log_softmax(x2, axis=-1)
        - jax.nn.log_softmax(t2 / temperature, axis=-1),
        axis=-1,
    )
    loss = p * d[None, :]  # same broadcast as torch: (N,V) * (N,) with N == V
    return jnp.mean(loss)


if __name__ == "__main__":
    key = jax.random.PRNGKey(0)
    k1, k2 = jax.random.split(key)
    B, S, V = 2, 256, 512          # N = B*S = 512 == V (required by the module)
    logits = jax.random.normal(k1, (B, S, V), dtype=jnp.float32)
    targets = jax.random.normal(k2, (B, S, V), dtype=jnp.float32)

    # tm=128 -> 4 row tiles, 2 "cores" x 2 inner steps: exercises the streaming
    # accumulation, the per-core partial colsums and the lane-major d writes.
    out = reverse_kl_div_loss(logits, targets, temperature=1.0, tm=128)
    out = jax.block_until_ready(out)

    ref = _reference(logits, targets, temperature=1.0)
    assert jnp.allclose(out, ref, rtol=2e-3, atol=1e-4), (out, ref)
    print("KERNEL_OK")
</pallas_src>

<mosaic_0001>
module attributes {stable_mosaic.version = 11 : i64} {
  func.func @_reverse_kl_kernel(%arg0: i32, %arg1: i32, %arg2: memref<128x512xf32, #tpu.memory_space<vmem>>, %arg3: memref<128x512xf32, #tpu.memory_space<vmem>>, %arg4: memref<1x1x512xf32, #tpu.memory_space<vmem>>, %arg5: memref<1x128xf32, #tpu.memory_space<vmem>>) attributes {dimension_semantics = [#tpu.dimension_semantics<parallel>, #tpu.dimension_semantics<arbitrary>], iteration_bounds = array<i64: 2, 2>, scalar_prefetch = 0 : i64, scratch_operands = 0 : i64, tpu.core_type = #tpu.core_type<tc>, window_params = [{transform_indices = @transform_0, window_bounds = array<i64: 128, 512>}, {transform_indices = @transform_1, window_bounds = array<i64: 128, 512>}, {transform_indices = @transform_2, window_bounds = array<i64: 1, 1, 512>}, {transform_indices = @transform_3, window_bounds = array<i64: 1, 128>}]} {
    %c0_i32 = arith.constant 0 : i32
    %0 = arith.cmpi eq, %arg1, %c0_i32 : i32
    %1 = arith.extui %0 : i1 to i32
    %c0_i32_0 = arith.constant 0 : i32
    %2 = arith.cmpi ne, %1, %c0_i32_0 : i32
    scf.if %2 {
      %cst_20 = arith.constant 0.000000e+00 : f32
      %45 = vector.broadcast %cst_20 : f32 to vector<1x1x512xf32>
      %c0_21 = arith.constant 0 : index
      %c0_22 = arith.constant 0 : index
      %c0_23 = arith.constant 0 : index
      %46 = vector.load %arg4[%c0_21, %c0_22, %c0_23] : memref<1x1x512xf32, #tpu.memory_space<vmem>>, vector<1x1x512xf32>
      tpu.vector_store %arg4[%c0_21, %c0_22, %c0_23], %45 {strides = array<i32>} : memref<1x1x512xf32, #tpu.memory_space<vmem>>, vector<1x1x512xf32>,
    } else {
    }
    %c0 = arith.constant 0 : index
    %c0_1 = arith.constant 0 : index
    %3 = vector.load %arg2[%c0, %c0_1] : memref<128x512xf32, #tpu.memory_space<vmem>>, vector<128x512xf32>
    %c0_2 = arith.constant 0 : index
    %c0_3 = arith.constant 0 : index
    %4 = vector.load %arg3[%c0_2, %c0_3] : memref<128x512xf32, #tpu.memory_space<vmem>>, vector<128x512xf32>
    %cst = arith.constant 1.000000e+00 : f32
    %5 = vector.broadcast %cst : f32 to vector<128x512xf32>
    %6 = arith.mulf %4, %5 : vector<128x512xf32>
    %cst_4 = arith.constant dense<0xFF800000> : vector<128xf32>
    %7 = vector.multi_reduction <maximumf>, %3, %cst_4 [1] : vector<128x512xf32> to vector<128xf32>
    %8 = vector.shape_cast %7 : vector<128xf32> to vector<128x1xf32>
    %cst_5 = arith.constant dense<0xFF800000> : vector<128xf32>
    %9 = vector.multi_reduction <maximumf>, %6, %cst_5 [1] : vector<128x512xf32> to vector<128xf32>
    %10 = vector.shape_cast %9 : vector<128xf32> to vector<128x1xf32>
    %11 = vector.broadcast %8 : vector<128x1xf32> to vector<128x512xf32>
    %12 = arith.subf %3, %11 : vector<128x512xf32>
    %13 = math.exp %12 : vector<128x512xf32>
    %14 = vector.broadcast %10 : vector<128x1xf32> to vector<128x512xf32>
    %15 = arith.subf %6, %14 : vector<128x512xf32>
    %16 = math.exp %15 : vector<128x512xf32>
    %cst_6 = arith.constant dense<0.000000e+00> : vector<128xf32>
    %17 = vector.multi_reduction <add>, %13, %cst_6 [1] : vector<128x512xf32> to vector<128xf32>
    %18 = vector.shape_cast %17 : vector<128xf32> to vector<128x1xf32>
    %cst_7 = arith.constant dense<0.000000e+00> : vector<128xf32>
    %19 = vector.multi_reduction <add>, %16, %cst_7 [1] : vector<128x512xf32> to vector<128xf32>
    %20 = vector.shape_cast %19 : vector<128xf32> to vector<128x1xf32>
    %21 = tpu.reciprocal %18 : vector<128x1xf32> -> vector<128x1xf32>
    %22 = vector.broadcast %21 : vector<128x1xf32> to vector<128x512xf32>
    %23 = arith.mulf %13, %22 : vector<128x512xf32>
    %24 = arith.subf %3, %6 : vector<128x512xf32>
    %cst_8 = arith.constant dense<0.000000e+00> : vector<128xf32>
    %25 = vector.multi_reduction <add>, %24, %cst_8 [1] : vector<128x512xf32> to vector<128xf32>
    %26 = vector.shape_cast %25 : vector<128xf32> to vector<128x1xf32>
    %27 = arith.subf %8, %10 : vector<128x1xf32>
    %cst_9 = arith.constant 5.120000e+02 : f32
    %28 = vector.broadcast %cst_9 : f32 to vector<128x1xf32>
    %29 = arith.mulf %28, %27 : vector<128x1xf32>
    %30 = arith.subf %26, %29 : vector<128x1xf32>
    %31 = math.log %20 : vector<128x1xf32>
    %32 = math.log %18 : vector<128x1xf32>
    %33 = arith.subf %31, %32 : vector<128x1xf32>
    %cst_10 = arith.constant 5.120000e+02 : f32
    %34 = vector.broadcast %cst_10 : f32 to vector<128x1xf32>
    %35 = arith.mulf %34, %33 : vector<128x1xf32>
    %36 = arith.addf %30, %35 : vector<128x1xf32>
    %c0_11 = arith.constant 0 : index
    %c0_12 = arith.constant 0 : index
    %c0_13 = arith.constant 0 : index
    %37 = vector.load %arg4[%c0_11, %c0_12, %c0_13] : memref<1x1x512xf32, #tpu.memory_space<vmem>>, vector<1x1x512xf32>
    %cst_14 = arith.constant dense<0.000000e+00> : vector<512xf32>
    %38 = vector.multi_reduction <add>, %23, %cst_14 [0] : vector<128x512xf32> to vector<512xf32>
    %39 = vector.shape_cast %38 : vector<512xf32> to vector<1x512xf32>
    %40 = vector.shape_cast %39 : vector<1x512xf32> to vector<1x1x512xf32>
    %41 = arith.addf %37, %40 : vector<1x1x512xf32>
    %c0_15 = arith.constant 0 : index
    %c0_16 = arith.constant 0 : index
    %c0_17 = arith.constant 0 : index
    %42 = vector.load %arg4[%c0_15, %c0_16, %c0_17] : memref<1x1x512xf32, #tpu.memory_space<vmem>>, vector<1x1x512xf32>
    tpu.vector_store %arg4[%c0_15, %c0_16, %c0_17], %41 {strides = array<i32>} : memref<1x1x512xf32, #tpu.memory_space<vmem>>, vector<1x1x512xf32>,
    %43 = vector.shape_cast %36 : vector<128x1xf32> to vector<1x128xf32>
    %c0_18 = arith.constant 0 : index
    %c0_19 = arith.constant 0 : index
    %44 = vector.load %arg5[%c0_18, %c0_19] : memref<1x128xf32, #tpu.memory_space<vmem>>, vector<1x128xf32>
    tpu.vector_store %arg5[%c0_18, %c0_19], %43 {strides = array<i32>} : memref<1x128xf32, #tpu.memory_space<vmem>>, vector<1x128xf32>,
    return
  }
  func.func @transform_0(%arg0: i32, %arg1: i32) -> (i32, i32) {
    %c2_i32 = arith.constant 2 : i32
    %0 = arith.muli %arg0, %c2_i32 : i32
    %1 = arith.addi %0, %arg1 : i32
    %c0_i32 = arith.constant 0 : i32
    %c0_i32_0 = arith.constant 0 : i32
    return %1, %c0_i32 : i32, i32
  }
  func.func @transform_1(%arg0: i32, %arg1: i32) -> (i32, i32) {
    %c2_i32 = arith.constant 2 : i32
    %0 = arith.muli %arg0, %c2_i32 : i32
    %1 = arith.addi %0, %arg1 : i32
    %c0_i32 = arith.constant 0 : i32
    %c0_i32_0 = arith.constant 0 : i32
    return %1, %c0_i32 : i32, i32
  }
  func.func @transform_2(%arg0: i32, %arg1: i32) -> (i32, i32, i32) {
    %c0_i32 = arith.constant 0 : i32
    %c0_i32_0 = arith.constant 0 : i32
    %c0_i32_1 = arith.constant 0 : i32
    return %arg0, %c0_i32, %c0_i32_0 : i32, i32, i32
  }
  func.func @transform_3(%arg0: i32, %arg1: i32) -> (i32, i32) {
    %c2_i32 = arith.constant 2 : i32
    %0 = arith.muli %arg0, %c2_i32 : i32
    %1 = arith.addi %0, %arg1 : i32
    %c0_i32 = arith.constant 0 : i32
    %c0_i32_0 = arith.constant 0 : i32
    return %c0_i32, %1 : i32, i32
  }
}

</mosaic_0001>

<llo_original>
// kernel: tpu_custom_call.1
$region0: #{tpu_custom_call.1}
  #allocation0 [shape = 'u32[]', space=smem, size = 0x4, offset = 0x4, fixed_abs, tag = 'smem constant byte address 0x4 - core index']
  #allocation1 [shape = 'u32[144,128]{1,0:T(1,128)}', space=vmem, size = 0x12000, scoped, tag = 'internal scratch']
  %s0 = inlined_call_operand.hbm [shape: f32[512,512], index: 0, kind: input, shape index: {}]
  %s1 = inlined_call_operand.hbm [shape: f32[512,512], index: 1, kind: input, shape index: {}]
  %s2 = inlined_call_operand.hbm [shape: f32[2,1,512], index: 2, kind: output, shape index: {0}]
  %s3 = inlined_call_operand.hbm [shape: f32[1,512], index: 3, kind: output, shape index: {1}]
  %4 = xla_tuple %s2, %s3
  %s5 = sld [smem:[#allocation0]]
  $region61: #{tpu_custom_call.1} parent=0
    _
  %s7 = ssub.s32 1, %s5
  %s8 = scalar_select 0, %s7, %s5
  $region1: #{tpu_custom_call.1} parent=0
    #allocation2 [shape = 'u8[524288]{0}', space=vmem, size = 0x80000, scoped, tag = 'input window, operand 0']
    #allocation3 [shape = 's32[2]{0}', space=sflag, size = 0x8, scoped, tag = 'scoped memory for tpu_custom_call.1']
    #allocation4 [shape = 's32[2]{0}', space=sflag, size = 0x8, scoped, tag = 'scoped memory for tpu_custom_call.1']
    #allocation5 [shape = 'u8[524288]{0}', space=vmem, size = 0x80000, scoped, tag = 'input window, operand 1']
    #allocation6 [shape = 's32[2]{0}', space=sflag, size = 0x8, scoped, tag = 'scoped memory for tpu_custom_call.1']
    #allocation7 [shape = 'u8[4096]{0}', space=vmem, size = 0x1000, scoped, tag = 'output window, operand 0']
    #allocation8 [shape = 'u8[1024]{0}', space=vmem, size = 0x400, scoped, tag = 'output window, operand 1']
    #allocation9 [shape = 's32[2]{0}', space=sflag, size = 0x8, scoped, tag = 'scoped memory for tpu_custom_call.1']
    %9 = vsyncpa [#allocation3], 0
    %s10 = scalar_lea.sflag [#allocation3], 1
    %11 = vsyncpa %s10, 0
    %12 = vsyncpa [#allocation6], 0
    %s13 = scalar_lea.sflag [#allocation6], 1
    %14 = vsyncpa %s13, 0
    %15 = vsyncpa [#allocation4], 0
    %s16 = scalar_lea.sflag [#allocation4], 1
    %17 = vsyncpa %s16, 0
    %18 = vsyncpa [#allocation9], 0
    %s19 = scalar_lea.sflag [#allocation9], 1
    %20 = vsyncpa %s19, 0
    loop: start=0, step=1, limit=6
    $region2: #{tpu_custom_call.1} parent=1 // loop_pre_header
      _
    $region3: #{tpu_custom_call.1} parent=1 // loop_header
      %s22 = sphi 0, %s26
      %p23 = scmp.ge.s32.totalorder %s22, 6
      %s29 = sphi 0, %s41
      %s30 = sphi 0, %s37
      %s31 = sphi 0, %s29
      %s32 = sphi 0, %s30
      %s33 = sphi 0, %s31
      %s34 = sphi 0, %s32
      %s48 = sphi 0, %s50
      %s51 = sphi 0, %s48
      %s52 = sphi 0, %s51
      %s68 = sphi 0, %s52
      %s78 = sphi 0, %s80
      %s81 = sphi 0, %s78
      %s82 = sphi 0, %s81
      %s98 = sphi 0, %s82
      %s104 = sphi 0, %s106
      %s107 = sphi 0, %s104
      %s108 = sphi 0, %s107
      %s124 = sphi 0, %s108
      %s134 = sphi 0, %s136
      %s137 = sphi 0, %s134
      %s138 = sphi 0, %s137
      %s154 = sphi 0, %s138
    $region4: #{tpu_custom_call.1} parent=1 // loop_header_branch
      %25 = sbr.rel (%p23) target = $region8
    $region5: #{tpu_custom_call.1} parent=1 // loop_body
      %s27 = ssub.s32 %s22, 1
      %s28 = ssub.s32 %s22, 2
      %s35 = sadd.s32 1, %s30
      %p36 = scmp.ge.s32.totalorder %s35, 2
      %s37 = scalar_select %p36, 0, %s35
      %s38 = sadd.s32 1, %s29
      %s39 = scalar_select %p36, %s38, %s29
      %p40 = scmp.ge.s32.totalorder %s39, 2
      %s41 = scalar_select %p40, 0, %s39
      %s42 = smul.u32 %s29, 2
      %s43 = sadd.s32 %s42, %s30
      %s44 = smul.u32 %s41, 2
      %s45 = sadd.s32 %s44, %s37
      %s46 = ssub.s32 %s43, %s45
      %p47 = scmp.eq.s32.totalorder %s46, 0
      %s49 = sadd.s32 %s48, 1
      %s50 = scalar_select %p47, %s48, %s49
      %p53 = pneg %p47
      %p54 = scmp.eq.s32.totalorder %s22, 3
      %p55 = por %p53, %p54
      %p56 = scmp.ne.s32.totalorder %s48, %s51
      %p57 = scmp.eq.s32.totalorder %s22, 0
      %p58 = por %p56, %p57
      %p59 = scmp.ne.s32.totalorder %s48, %s51
      %p60 = scmp.eq.s32.totalorder %s27, 3
      %p61 = por %p59, %p60
      %p62 = scmp.ne.s32.totalorder %s51, %s52
      %p63 = scmp.eq.s32.totalorder %s27, 0
      %p64 = por %p62, %p63
      %p65 = scmp.ne.s32.totalorder %s51, %s52
      %p66 = scmp.eq.s32.totalorder %s28, 3
      %p67 = por %p65, %p66
      %p69 = scmp.ne.s32.totalorder %s52, %s68
      %p70 = scmp.eq.s32.totalorder %s28, 0
      %p71 = por %p69, %p70
      %s72 = smul.u32 %s29, 2
      %s73 = sadd.s32 %s72, %s30
      %s74 = smul.u32 %s41, 2
      %s75 = sadd.s32 %s74, %s37
      %s76 = ssub.s32 %s73, %s75
      %p77 = scmp.eq.s32.totalorder %s76, 0
      %s79 = sadd.s32 %s78, 1
      %s80 = scalar_select %p77, %s78, %s79
      %p83 = pneg %p77
      %p84 = scmp.eq.s32.totalorder %s22, 3
      %p85 = por %p83, %p84
      %p86 = scmp.ne.s32.totalorder %s78, %s81
      %p87 = scmp.eq.s32.totalorder %s22, 0
      %p88 = por %p86, %p87
      %p89 = scmp.ne.s32.totalorder %s78, %s81
      %p90 = scmp.eq.s32.totalorder %s27, 3
      %p91 = por %p89, %p90
      %p92 = scmp.ne.s32.totalorder %s81, %s82
      %p93 = scmp.eq.s32.totalorder %s27, 0
      %p94 = por %p92, %p93
      %p95 = scmp.ne.s32.totalorder %s81, %s82
      %p96 = scmp.eq.s32.totalorder %s28, 3
      %p97 = por %p95, %p96
      %p99 = scmp.ne.s32.totalorder %s82, %s98
      %p100 = scmp.eq.s32.totalorder %s28, 0
      %p101 = por %p99, %p100
      %s102 = ssub.s32 %s29, %s41
      %p103 = scmp.eq.s32.totalorder %s102, 0
      %s105 = sadd.s32 %s104, 1
      %s106 = scalar_select %p103, %s104, %s105
      %p109 = pneg %p103
      %p110 = scmp.eq.s32.totalorder %s22, 3
      %p111 = por %p109, %p110
      %p112 = scmp.ne.s32.totalorder %s104, %s107
      %p113 = scmp.eq.s32.totalorder %s22, 0
      %p114 = por %p112, %p113
      %p115 = scmp.ne.s32.totalorder %s104, %s107
      %p116 = scmp.eq.s32.totalorder %s27, 3
      %p117 = por %p115, %p116
      %p118 = scmp.ne.s32.totalorder %s107, %s108
      %p119 = scmp.eq.s32.totalorder %s27, 0
      %p120 = por %p118, %p119
      %p121 = scmp.ne.s32.totalorder %s107, %s108
      %p122 = scmp.eq.s32.totalorder %s28, 3
      %p123 = por %p121, %p122
      %p125 = scmp.ne.s32.totalorder %s108, %s124
      %p126 = scmp.eq.s32.totalorder %s28, 0
      %p127 = por %p125, %p126
      %s128 = smul.u32 %s29, 2
      %s129 = sadd.s32 %s128, %s30
      %s130 = smul.u32 %s41, 2
      %s131 = sadd.s32 %s130, %s37
      %s132 = ssub.s32 %s129, %s131
      %p133 = scmp.eq.s32.totalorder %s132, 0
      %s135 = sadd.s32 %s134, 1
      %s136 = scalar_select %p133, %s134, %s135
      %p139 = pneg %p133
      %p140 = scmp.eq.s32.totalorder %s22, 3
      %p141 = por %p139, %p140
      %p142 = scmp.ne.s32.totalorder %s134, %s137
      %p143 = scmp.eq.s32.totalorder %s22, 0
      %p144 = por %p142, %p143
      %p145 = scmp.ne.s32.totalorder %s134, %s137
      %p146 = scmp.eq.s32.totalorder %s27, 3
      %p147 = por %p145, %p146
      %p148 = scmp.ne.s32.totalorder %s137, %s138
      %p149 = scmp.eq.s32.totalorder %s27, 0
      %p150 = por %p148, %p149
      %p151 = scmp.ne.s32.totalorder %s137, %s138
      %p152 = scmp.eq.s32.totalorder %s28, 3
      %p153 = por %p151, %p152
      %p155 = scmp.ne.s32.totalorder %s138, %s154
      %p156 = scmp.eq.s32.totalorder %s28, 0
      %p157 = por %p155, %p156
      %p158 = scmp.le.s32.totalorder 1, %s22
      %p159 = scmp.lt.s32.totalorder %s22, 5
      %p160 = pnand %p158, %p159
      %p161 = pneg %p160
      // Predicated region
      $region9: #{tpu_custom_call.1} parent=5 // pred_check
        _
      $region10: #{tpu_custom_call.1} parent=5 // pred_check_branch
        %163 = sbr.rel (%p160) target = $region12
      $region11: #{tpu_custom_call.1} parent=5 // pred_region
        %s164 = ssub.s32 %s22, 1
      $region12: #{tpu_custom_call.1} parent=5 // pred_fallthru
        _
      %p165 = scmp.lt.s32.totalorder %s22, 4
      // Predicated region
      $region13: #{tpu_custom_call.1} parent=5 // pred_check
        %p166 = pneg %p165
      $region14: #{tpu_custom_call.1} parent=5 // pred_check_branch
        %168 = sbr.rel (%p166) target = $region16
      $region15: #{tpu_custom_call.1} parent=5 // pred_region
        // Predicated region
        $region17: #{tpu_custom_call.1} parent=15 // pred_check
          %p169 = pneg %p58
        $region18: #{tpu_custom_call.1} parent=15 // pred_check_branch
          %171 = sbr.rel (%p169) target = $region20
        $region19: #{tpu_custom_call.1} parent=15 // pred_region
          %s172 = sand.u32 %s48, 1
          %s173 = scalar_lea.sflag [#allocation3], %s172
          %s174 = sand.u32 %s48, 1
          %s175 = smul.addr %s174, 512
          %s176 = scalar_lea.vmem [#allocation2], %s175
          %s177 = smul.u32 %s29, 2
          %s178 = sadd.s32 %s177, %s30
          %s179 = smul.u32 16, %s178
          %s181 = ssub.s32 8192, 8192
          %182 = vsyncadd %s173, %s181
          %s183 = smul.addr %s179, 4
          %s184 = smul.addr %s183, 128
          %s185 = scalar_lea.hbm %s0, %s184
          %s186 = sshll.u32 %s176, 4
          %s187 = int_to_ptr.vmem [resolvable:$true] %s186
          %192 = dma.hbm_to_vmem [thread:$0]  %s185, 8192, %s187, %s173, 512, 512, 32
        $region20: #{tpu_custom_call.1} parent=15 // pred_fallthru
          _
        // Predicated region
        $region21: #{tpu_custom_call.1} parent=15 // pred_check
          %p193 = pneg %p88
        $region22: #{tpu_custom_call.1} parent=15 // pred_check_branch
          %195 = sbr.rel (%p193) target = $region24
        $region23: #{tpu_custom_call.1} parent=15 // pred_region
          %s196 = sand.u32 %s78, 1
          %s197 = scalar_lea.sflag [#allocation6], %s196
          %s198 = sand.u32 %s78, 1
          %s199 = smul.addr %s198, 512
          %s200 = scalar_lea.vmem [#allocation5], %s199
          %s201 = smul.u32 %s29, 2
          %s202 = sadd.s32 %s201, %s30
          %s203 = smul.u32 16, %s202
          %s205 = ssub.s32 8192, 8192
          %206 = vsyncadd %s197, %s205
          %s207 = smul.addr %s203, 4
          %s208 = smul.addr %s207, 128
          %s209 = scalar_lea.hbm %s1, %s208
          %s210 = sshll.u32 %s200, 4
          %s211 = int_to_ptr.vmem [resolvable:$true] %s210
          %216 = dma.hbm_to_vmem [thread:$0]  %s209, 8192, %s211, %s197, 512, 512, 32
        $region24: #{tpu_custom_call.1} parent=15 // pred_fallthru
          _
      $region16: #{tpu_custom_call.1} parent=5 // pred_fallthru
        _
      %p217 = scmp.le.s32.totalorder 1, %s22
      %p218 = scmp.lt.s32.totalorder %s22, 5
      %p219 = pnand %p217, %p218
      %p220 = pneg %p219
      // Predicated region
      $region25: #{tpu_custom_call.1} parent=5 // pred_check
        _
      $region26: #{tpu_custom_call.1} parent=5 // pred_check_branch
        %222 = sbr.rel (%p219) target = $region28
      $region27: #{tpu_custom_call.1} parent=5 // pred_region
        %s223 = ssub.s32 %s22, 1
        %s224 = sand.u32 %s51, 1
        %s225 = scalar_lea.sflag [#allocation3], %s224
        %s226 = sand.u32 %s51, 1
        %s227 = smul.addr %s226, 512
        %s228 = scalar_lea.vmem [#allocation2], %s227
        // Predicated region
        $region29: #{tpu_custom_call.1} parent=27 // pred_check
          %p229 = pneg %p64
        $region30: #{tpu_custom_call.1} parent=27 // pred_check_branch
          %231 = sbr.rel (%p229) target = $region32
        $region31: #{tpu_custom_call.1} parent=27 // pred_region
          %232 = dma.done %s225, 8192
        $region32: #{tpu_custom_call.1} parent=27 // pred_fallthru
          _
        %s233 = sand.u32 %s81, 1
        %s234 = scalar_lea.sflag [#allocation6], %s233
        %s235 = sand.u32 %s81, 1
        %s236 = smul.addr %s235, 512
        %s237 = scalar_lea.vmem [#allocation5], %s236
        // Predicated region
        $region33: #{tpu_custom_call.1} parent=27 // pred_check
          %p238 = pneg %p94
        $region34: #{tpu_custom_call.1} parent=27 // pred_check_branch
          %240 = sbr.rel (%p238) target = $region36
        $region35: #{tpu_custom_call.1} parent=27 // pred_region
          %241 = dma.done %s234, 8192
        $region36: #{tpu_custom_call.1} parent=27 // pred_fallthru
          _
        %s242 = sand.u32 %s51, 1
        %s243 = scalar_lea.sflag [#allocation3], %s242
        %s244 = sand.u32 %s51, 1
        %s245 = smul.addr %s244, 512
        %s246 = scalar_lea.vmem [#allocation2], %s245
        %p247 = pneg %p64
        %p248 = pneg %p61
        %s249 = sand.u32 %s81, 1
        %s250 = scalar_lea.sflag [#allocation6], %s249
        %s251 = sand.u32 %s81, 1
        %s252 = smul.addr %s251, 512
        %s253 = scalar_lea.vmem [#allocation5], %s252
        %p254 = pneg %p94
        %p255 = pneg %p91
        %p256 = pneg %p120
        %p257 = pneg %p117
        %s258 = sand.u32 %s107, 1
        %s259 = scalar_lea.sflag [#allocation4], %s258
        %s260 = sand.u32 %s107, 1
        %s261 = smul.addr %s260, 4
        %s262 = scalar_lea.vmem [#allocation7], %s261
        %p263 = pneg %p150
        %p264 = pneg %p147
        %s265 = sand.u32 %s137, 1
        %s266 = scalar_lea.sflag [#allocation9], %s265
        %s267 = sand.u32 %s137, 1
        %s268 = scalar_lea.vmem [#allocation8], %s267
        %s269 = smul.u32 %s31, 2
        %s270 = sadd.s32 %s269, %s32
        %s271 = smul.u32 16, %s270
        %s272 = smul.u32 %s31, 2
        %s273 = sadd.s32 %s272, %s32
        %s274 = smul.u32 16, %s273
        %s275 = smul.u32 %s31, 2
        %s276 = sadd.s32 %s275, %s32
        %p277 = scmp.eq.s32.totalorder %s32, 0
        // Predicated region
        $region37: #{tpu_custom_call.1} parent=27 // pred_check
          %p278 = pneg %p277
        $region38: #{tpu_custom_call.1} parent=27 // pred_check_branch
          %280 = sbr.rel (%p278) target = $region40
        $region39: #{tpu_custom_call.1} parent=27 // pred_region
          %v281 = vlaneseq
          %vm282 = vcmp.ge.s32.totalorder %v281, 0
          %vm283 = vcmp.lt.s32.totalorder %v281, 512
          %vm284 = vmand %vm282, %vm283
          %285 = vst.msk [vmem:[%s262] sm:$0xf] %vm284, 0.0
        $region40: #{tpu_custom_call.1} parent=27 // pred_fallthru
          _
        %v286 = vld [vmem:[%s228] sm:$0xff]
        %v287 = vld [vmem:[%s228 + $0x8] sm:$0xff]
        %v288 = vld [vmem:[%s228 + $0x10] sm:$0xff]
        %v289 = vld [vmem:[%s228 + $0x18] sm:$0xff]
        %v290 = vld [vmem:[%s228 + $0x20] sm:$0xff]
        %v291 = vld [vmem:[%s228 + $0x28] sm:$0xff]
        %v292 = vld [vmem:[%s228 + $0x30] sm:$0xff]
        %v293 = vld [vmem:[%s228 + $0x38] sm:$0xff]
        %v294 = vld [vmem:[%s228 + $0x40] sm:$0xff]
        %v295 = vld [vmem:[%s228 + $0x48] sm:$0xff]
        %v296 = vld [vmem:[%s228 + $0x50] sm:$0xff]
        %v297 = vld [vmem:[%s228 + $0x58] sm:$0xff]
        %v298 = vld [vmem:[%s228 + $0x60] sm:$0xff]
        %v299 = vld [vmem:[%s228 + $0x68] sm:$0xff]
        %v300 = vld [vmem:[%s228 + $0x70] sm:$0xff]
        %v301 = vld [vmem:[%s228 + $0x78] sm:$0xff]
        %v302 = vld [vmem:[%s228 + $0x80] sm:$0xff]
        %v303 = vld [vmem:[%s228 + $0x88] sm:$0xff]
        %v304 = vld [vmem:[%s228 + $0x90] sm:$0xff]
        %v305 = vld [vmem:[%s228 + $0x98] sm:$0xff]
        %v306 = vld [vmem:[%s228 + $0xa0] sm:$0xff]
        %v307 = vld [vmem:[%s228 + $0xa8] sm:$0xff]
        %v308 = vld [vmem:[%s228 + $0xb0] sm:$0xff]
        %v309 = vld [vmem:[%s228 + $0xb8] sm:$0xff]
        %v310 = vld [vmem:[%s228 + $0xc0] sm:$0xff]
        %v311 = vld [vmem:[%s228 + $0xc8] sm:$0xff]
        %v312 = vld [vmem:[%s228 + $0xd0] sm:$0xff]
        %v313 = vld [vmem:[%s228 + $0xd8] sm:$0xff]
        %v314 = vld [vmem:[%s228 + $0xe0] sm:$0xff]
        %v315 = vld [vmem:[%s228 + $0xe8] sm:$0xff]
        %v316 = vld [vmem:[%s228 + $0xf0] sm:$0xff]
        %v317 = vld [vmem:[%s228 + $0xf8] sm:$0xff]
        %v318 = vld [vmem:[%s228 + $0x100] sm:$0xff]
        %v319 = vld [vmem:[%s228 + $0x108] sm:$0xff]
        %v320 = vld [vmem:[%s228 + $0x110] sm:$0xff]
        %v321 = vld [vmem:[%s228 + $0x118] sm:$0xff]
        %v322 = vld [vmem:[%s228 + $0x120] sm:$0xff]
        %v323 = vld [vmem:[%s228 + $0x128] sm:$0xff]
        %v324 = vld [vmem:[%s228 + $0x130] sm:$0xff]
        %v325 = vld [vmem:[%s228 + $0x138] sm:$0xff]
        %v326 = vld [vmem:[%s228 + $0x140] sm:$0xff]
        %v327 = vld [vmem:[%s228 + $0x148] sm:$0xff]
        %v328 = vld [vmem:[%s228 + $0x150] sm:$0xff]
        %v329 = vld [vmem:[%s228 + $0x158] sm:$0xff]
        %v330 = vld [vmem:[%s228 + $0x160] sm:$0xff]
        %v331 = vld [vmem:[%s228 + $0x168] sm:$0xff]
        %v332 = vld [vmem:[%s228 + $0x170] sm:$0xff]
        %v333 = vld [vmem:[%s228 + $0x178] sm:$0xff]
        %v334 = vld [vmem:[%s228 + $0x180] sm:$0xff]
        %v335 = vld [vmem:[%s228 + $0x188] sm:$0xff]
        %v336 = vld [vmem:[%s228 + $0x190] sm:$0xff]
        %v337 = vld [vmem:[%s228 + $0x198] sm:$0xff]
        %v338 = vld [vmem:[%s228 + $0x1a0] sm:$0xff]
        %v339 = vld [vmem:[%s228 + $0x1a8] sm:$0xff]
        %v340 = vld [vmem:[%s228 + $0x1b0] sm:$0xff]
        %v341 = vld [vmem:[%s228 + $0x1b8] sm:$0xff]
        %v342 = vld [vmem:[%s228 + $0x1c0] sm:$0xff]
        %v343 = vld [vmem:[%s228 + $0x1c8] sm:$0xff]
        %v344 = vld [vmem:[%s228 + $0x1d0] sm:$0xff]
        %v345 = vld [vmem:[%s228 + $0x1d8] sm:$0xff]
        %v346 = vld [vmem:[%s228 + $0x1e0] sm:$0xff]
        %v347 = vld [vmem:[%s228 + $0x1e8] sm:$0xff]
        %v348 = vld [vmem:[%s228 + $0x1f0] sm:$0xff]
        %v349 = vld [vmem:[%s228 + $0x1f8] sm:$0xff]
        %v350 = vld [vmem:[%s237] sm:$0xff]
        %v351 = vld [vmem:[%s237 + $0x8] sm:$0xff]
        %v352 = vld [vmem:[%s237 + $0x10] sm:$0xff]
        %v353 = vld [vmem:[%s237 + $0x18] sm:$0xff]
        %v354 = vld [vmem:[%s237 + $0x20] sm:$0xff]
        %v355 = vld [vmem:[%s237 + $0x28] sm:$0xff]
        %v356 = vld [vmem:[%s237 + $0x30] sm:$0xff]
        %v357 = vld [vmem:[%s237 + $0x38] sm:$0xff]
        %v358 = vld [vmem:[%s237 + $0x40] sm:$0xff]
        %v359 = vld [vmem:[%s237 + $0x48] sm:$0xff]
        %v360 = vld [vmem:[%s237 + $0x50] sm:$0xff]
        %v361 = vld [vmem:[%s237 + $0x58] sm:$0xff]
        %v362 = vld [vmem:[%s237 + $0x60] sm:$0xff]
        %v363 = vld [vmem:[%s237 + $0x68] sm:$0xff]
        %v364 = vld [vmem:[%s237 + $0x70] sm:$0xff]
        %v365 = vld [vmem:[%s237 + $0x78] sm:$0xff]
        %v366 = vld [vmem:[%s237 + $0x80] sm:$0xff]
        %v367 = vld [vmem:[%s237 + $0x88] sm:$0xff]
        %v368 = vld [vmem:[%s237 + $0x90] sm:$0xff]
        %v369 = vld [vmem:[%s237 + $0x98] sm:$0xff]
        %v370 = vld [vmem:[%s237 + $0xa0] sm:$0xff]
        %v371 = vld [vmem:[%s237 + $0xa8] sm:$0xff]
        %v372 = vld [vmem:[%s237 + $0xb0] sm:$0xff]
        %v373 = vld [vmem:[%s237 + $0xb8] sm:$0xff]
        %v374 = vld [vmem:[%s237 + $0xc0] sm:$0xff]
        %v375 = vld [vmem:[%s237 + $0xc8] sm:$0xff]
        %v376 = vld [vmem:[%s237 + $0xd0] sm:$0xff]
        %v377 = vld [vmem:[%s237 + $0xd8] sm:$0xff]
        %v378 = vld [vmem:[%s237 + $0xe0] sm:$0xff]
        %v379 = vld [vmem:[%s237 + $0xe8] sm:$0xff]
        %v380 = vld [vmem:[%s237 + $0xf0] sm:$0xff]
        %v381 = vld [vmem:[%s237 + $0xf8] sm:$0xff]
        %v382 = vld [vmem:[%s237 + $0x100] sm:$0xff]
        %v383 = vld [vmem:[%s237 + $0x108] sm:$0xff]
        %v384 = vld [vmem:[%s237 + $0x110] sm:$0xff]
        %v385 = vld [vmem:[%s237 + $0x118] sm:$0xff]
        %v386 = vld [vmem:[%s237 + $0x120] sm:$0xff]
        %v387 = vld [vmem:[%s237 + $0x128] sm:$0xff]
        %v388 = vld [vmem:[%s237 + $0x130] sm:$0xff]
        %v389 = vld [vmem:[%s237 + $0x138] sm:$0xff]
        %v390 = vld [vmem:[%s237 + $0x140] sm:$0xff]
        %v391 = vld [vmem:[%s237 + $0x148] sm:$0xff]
        %v392 = vld [vmem:[%s237 + $0x150] sm:$0xff]
        %v393 = vld [vmem:[%s237 + $0x158] sm:$0xff]
        %v394 = vld [vmem:[%s237 + $0x160] sm:$0xff]
        %v395 = vld [vmem:[%s237 + $0x168] sm:$0xff]
        %v396 = vld [vmem:[%s237 + $0x170] sm:$0xff]
        %v397 = vld [vmem:[%s237 + $0x178] sm:$0xff]
        %v398 = vld [vmem:[%s237 + $0x180] sm:$0xff]
        %v399 = vld [vmem:[%s237 + $0x188] sm:$0xff]
        %v400 = vld [vmem:[%s237 + $0x190] sm:$0xff]
        %v401 = vld [vmem:[%s237 + $0x198] sm:$0xff]
        %v402 = vld [vmem:[%s237 + $0x1a0] sm:$0xff]
        %v403 = vld [vmem:[%s237 + $0x1a8] sm:$0xff]
        %v404 = vld [vmem:[%s237 + $0x1b0] sm:$0xff]
        %v405 = vld [vmem:[%s237 + $0x1b8] sm:$0xff]
        %v406 = vld [vmem:[%s237 + $0x1c0] sm:$0xff]
        %v407 = vld [vmem:[%s237 + $0x1c8] sm:$0xff]
        %v408 = vld [vmem:[%s237 + $0x1d0] sm:$0xff]
        %v409 = vld [vmem:[%s237 + $0x1d8] sm:$0xff]
        %v410 = vld [vmem:[%s237 + $0x1e0] sm:$0xff]
        %v411 = vld [vmem:[%s237 + $0x1e8] sm:$0xff]
        %v412 = vld [vmem:[%s237 + $0x1f0] sm:$0xff]
        %v413 = vld [vmem:[%s237 + $0x1f8] sm:$0xff]
        %v414 = vmax.f32 %v286, %v287
        %v415 = vmax.f32 %v414, %v288
        %v416 = vmax.f32 %v415, %v289
        %417 = vmax.xlane.f32.xlu0 %v416
        %v418 = vpop.xlane.xlu0 %417
        %v419 = vmax.f32 %v290, %v291
        %v420 = vmax.f32 %v419, %v292
        %v421 = vmax.f32 %v420, %v293
        %422 = vmax.xlane.f32.xlu0 %v421
        %v423 = vpop.xlane.xlu0 %422
        %v424 = vmax.f32 %v294, %v295
        %v425 = vmax.f32 %v424, %v296
        %v426 = vmax.f32 %v425, %v297
        %427 = vmax.xlane.f32.xlu0 %v426
        %v428 = vpop.xlane.xlu0 %427
        %v429 = vmax.f32 %v298, %v299
        %v430 = vmax.f32 %v429, %v300
        %v431 = vmax.f32 %v430, %v301
        %432 = vmax.xlane.f32.xlu0 %v431
        %v433 = vpop.xlane.xlu0 %432
        %v434 = vmax.f32 %v302, %v303
        %v435 = vmax.f32 %v434, %v304
        %v436 = vmax.f32 %v435, %v305
        %437 = vmax.xlane.f32.xlu0 %v436
        %v438 = vpop.xlane.xlu0 %437
        %v439 = vmax.f32 %v306, %v307
        %v440 = vmax.f32 %v439, %v308
        %v441 = vmax.f32 %v440, %v309
        %442 = vmax.xlane.f32.xlu0 %v441
        %v443 = vpop.xlane.xlu0 %442
        %v444 = vmax.f32 %v310, %v311
        %v445 = vmax.f32 %v444, %v312
        %v446 = vmax.f32 %v445, %v313
        %447 = vmax.xlane.f32.xlu0 %v446
        %v448 = vpop.xlane.xlu0 %447
        %v449 = vmax.f32 %v314, %v315
        %v450 = vmax.f32 %v449, %v316
        %v451 = vmax.f32 %v450, %v317
        %452 = vmax.xlane.f32.xlu0 %v451
        %v453 = vpop.xlane.xlu0 %452
        %v454 = vmax.f32 %v318, %v319
        %v455 = vmax.f32 %v454, %v320
        %v456 = vmax.f32 %v455, %v321
        %457 = vmax.xlane.f32.xlu0 %v456
        %v458 = vpop.xlane.xlu0 %457
        %v459 = vmax.f32 %v322, %v323
        %v460 = vmax.f32 %v459, %v324
        %v461 = vmax.f32 %v460, %v325
        %462 = vmax.xlane.f32.xlu0 %v461
        %v463 = vpop.xlane.xlu0 %462
        %v464 = vmax.f32 %v326, %v327
        %v465 = vmax.f32 %v464, %v328
        %v466 = vmax.f32 %v465, %v329
        %467 = vmax.xlane.f32.xlu0 %v466
        %v468 = vpop.xlane.xlu0 %467
        %v469 = vmax.f32 %v330, %v331
        %v470 = vmax.f32 %v469, %v332
        %v471 = vmax.f32 %v470, %v333
        %472 = vmax.xlane.f32.xlu0 %v471
        %v473 = vpop.xlane.xlu0 %472
        %v474 = vmax.f32 %v334, %v335
        %v475 = vmax.f32 %v474, %v336
        %v476 = vmax.f32 %v475, %v337
        %477 = vmax.xlane.f32.xlu0 %v476
        %v478 = vpop.xlane.xlu0 %477
        %v479 = vmax.f32 %v338, %v339
        %v480 = vmax.f32 %v479, %v340
        %v481 = vmax.f32 %v480, %v341
        %482 = vmax.xlane.f32.xlu0 %v481
        %v483 = vpop.xlane.xlu0 %482
        %v484 = vmax.f32 %v342, %v343
        %v485 = vmax.f32 %v484, %v344
        %v486 = vmax.f32 %v485, %v345
        %487 = vmax.xlane.f32.xlu0 %v486
        %v488 = vpop.xlane.xlu0 %487
        %v489 = vmax.f32 %v346, %v347
        %v490 = vmax.f32 %v489, %v348
        %v491 = vmax.f32 %v490, %v349
        %492 = vmax.xlane.f32.xlu0 %v491
        %v493 = vpop.xlane.xlu0 %492
        %v494 = vmax.f32 %v350, %v351
        %v495 = vmax.f32 %v494, %v352
        %v496 = vmax.f32 %v495, %v353
        %497 = vmax.xlane.f32.xlu0 %v496
        %v498 = vpop.xlane.xlu0 %497
        %v499 = vmax.f32 %v354, %v355
        %v500 = vmax.f32 %v499, %v356
        %v501 = vmax.f32 %v500, %v357
        %502 = vmax.xlane.f32.xlu0 %v501
        %v503 = vpop.xlane.xlu0 %502
        %v504 = vmax.f32 %v358, %v359
        %v505 = vmax.f32 %v504, %v360
        %v506 = vmax.f32 %v505, %v361
        %507 = vmax.xlane.f32.xlu0 %v506
        %v508 = vpop.xlane.xlu0 %507
        %v509 = vmax.f32 %v362, %v363
        %v510 = vmax.f32 %v509, %v364
        %v511 = vmax.f32 %v510, %v365
        %512 = vmax.xlane.f32.xlu0 %v511
        %v513 = vpop.xlane.xlu0 %512
        %v514 = vmax.f32 %v366, %v367
        %v515 = vmax.f32 %v514, %v368
        %v516 = vmax.f32 %v515, %v369
        %517 = vmax.xlane.f32.xlu0 %v516
        %v518 = vpop.xlane.xlu0 %517
        %v519 = vmax.f32 %v370, %v371
        %v520 = vmax.f32 %v519, %v372
        %v521 = vmax.f32 %v520, %v373
        %522 = vmax.xlane.f32.xlu0 %v521
        %v523 = vpop.xlane.xlu0 %522
        %v524 = vmax.f32 %v374, %v375
        %v525 = vmax.f32 %v524, %v376
        %v526 = vmax.f32 %v525, %v377
        %527 = vmax.xlane.f32.xlu0 %v526
        %v528 = vpop.xlane.xlu0 %527
        %v529 = vmax.f32 %v378, %v379
        %v530 = vmax.f32 %v529, %v380
        %v531 = vmax.f32 %v530, %v381
        %532 = vmax.xlane.f32.xlu0 %v531
        %v533 = vpop.xlane.xlu0 %532
        %v534 = vmax.f32 %v382, %v383
        %v535 = vmax.f32 %v534, %v384
        %v536 = vmax.f32 %v535, %v385
        %537 = vmax.xlane.f32.xlu0 %v536
        %v538 = vpop.xlane.xlu0 %537
        %v539 = vmax.f32 %v386, %v387
        %v540 = vmax.f32 %v539, %v388
        %v541 = vmax.f32 %v540, %v389
        %542 = vmax.xlane.f32.xlu0 %v541
        %v543 = vpop.xlane.xlu0 %542
        %v544 = vmax.f32 %v390, %v391
        %v545 = vmax.f32 %v544, %v392
        %v546 = vmax.f32 %v545, %v393
        %547 = vmax.xlane.f32.xlu0 %v546
        %v548 = vpop.xlane.xlu0 %547
        %v549 = vmax.f32 %v394, %v395
        %v550 = vmax.f32 %v549, %v396
        %v551 = vmax.f32 %v550, %v397
        %552 = vmax.xlane.f32.xlu0 %v551
        %v553 = vpop.xlane.xlu0 %552
        %v554 = vmax.f32 %v398, %v399
        %v555 = vmax.f32 %v554, %v400
        %v556 = vmax.f32 %v555, %v401
        %557 = vmax.xlane.f32.xlu0 %v556
        %v558 = vpop.xlane.xlu0 %557
        %v559 = vmax.f32 %v402, %v403
        %v560 = vmax.f32 %v559, %v404
        %v561 = vmax.f32 %v560, %v405
        %562 = vmax.xlane.f32.xlu0 %v561
        %v563 = vpop.xlane.xlu0 %562
        %v564 = vmax.f32 %v406, %v407
        %v565 = vmax.f32 %v564, %v408
        %v566 = vmax.f32 %v565, %v409
        %567 = vmax.xlane.f32.xlu0 %v566
        %v568 = vpop.xlane.xlu0 %567
        %v569 = vmax.f32 %v410, %v411
        %v570 = vmax.f32 %v569, %v412
        %v571 = vmax.f32 %v570, %v413
        %572 = vmax.xlane.f32.xlu0 %v571
        %v573 = vpop.xlane.xlu0 %572
        %v574 = vsub.f32 %v286, %v418
        %v575 = vsub.f32 %v287, %v418
        %v576 = vsub.f32 %v288, %v418
        %v577 = vsub.f32 %v289, %v418
        %v578 = vsub.f32 %v290, %v423
        %v579 = vsub.f32 %v291, %v423
        %v580 = vsub.f32 %v292, %v423
        %v581 = vsub.f32 %v293, %v423
        %v582 = vsub.f32 %v294, %v428
        %v583 = vsub.f32 %v295, %v428
        %v584 = vsub.f32 %v296, %v428
        %v585 = vsub.f32 %v297, %v428
        %v586 = vsub.f32 %v298, %v433
        %v587 = vsub.f32 %v299, %v433
        %v588 = vsub.f32 %v300, %v433
        %v589 = vsub.f32 %v301, %v433
        %v590 = vsub.f32 %v302, %v438
        %v591 = vsub.f32 %v303, %v438
        %v592 = vsub.f32 %v304, %v438
        %v593 = vsub.f32 %v305, %v438
        %v594 = vsub.f32 %v306, %v443
        %v595 = vsub.f32 %v307, %v443
        %v596 = vsub.f32 %v308, %v443
        %v597 = vsub.f32 %v309, %v443
        %v598 = vsub.f32 %v310, %v448
        %v599 = vsub.f32 %v311, %v448
        %v600 = vsub.f32 %v312, %v448
        %v601 = vsub.f32 %v313, %v448
        %v602 = vsub.f32 %v314, %v453
        %v603 = vsub.f32 %v315, %v453
        %v604 = vsub.f32 %v316, %v453
        %v605 = vsub.f32 %v317, %v453
        %v606 = vsub.f32 %v318, %v458
        %v607 = vsub.f32 %v319, %v458
        %v608 = vsub.f32 %v320, %v458
        %v609 = vsub.f32 %v321, %v458
        %v610 = vsub.f32 %v322, %v463
        %v611 = vsub.f32 %v323, %v463
        %v612 = vsub.f32 %v324, %v463
        %v613 = vsub.f32 %v325, %v463
        %v614 = vsub.f32 %v326, %v468
        %v615 = vsub.f32 %v327, %v468
        %v616 = vsub.f32 %v328, %v468
        %v617 = vsub.f32 %v329, %v468
        %v618 = vsub.f32 %v330, %v473
        %v619 = vsub.f32 %v331, %v473
        %v620 = vsub.f32 %v332, %v473
        %v621 = vsub.f32 %v333, %v473
        %v622 = vsub.f32 %v334, %v478
        %v623 = vsub.f32 %v335, %v478
        %v624 = vsub.f32 %v336, %v478
        %v625 = vsub.f32 %v337, %v478
        %v626 = vsub.f32 %v338, %v483
        %v627 = vsub.f32 %v339, %v483
        %v628 = vsub.f32 %v340, %v483
        %v629 = vsub.f32 %v341, %v483
        %v630 = vsub.f32 %v342, %v488
        %v631 = vsub.f32 %v343, %v488
        %v632 = vsub.f32 %v344, %v488
        %v633 = vsub.f32 %v345, %v488
        %v634 = vsub.f32 %v346, %v493
        %v635 = vsub.f32 %v347, %v493
        %v636 = vsub.f32 %v348, %v493
        %v637 = vsub.f32 %v349, %v493
        %v638 = vmul.f32 %v574, 1.442695
        %v639 = vpow.pop %v638
        %v640 = vmul.f32 %v575, 1.442695
        %v641 = vpow.pop %v640
        %v642 = vmul.f32 %v576, 1.442695
        %v643 = vpow.pop %v642
        %v644 = vmul.f32 %v577, 1.442695
        %v645 = vpow.pop %v644
        %v646 = vmul.f32 %v578, 1.442695
        %v647 = vpow.pop %v646
        %v648 = vmul.f32 %v579, 1.442695
        %v649 = vpow.pop %v648
        %v650 = vmul.f32 %v580, 1.442695
        %v651 = vpow.pop %v650
        %v652 = vmul.f32 %v581, 1.442695
        %v653 = vpow.pop %v652
        %v654 = vmul.f32 %v582, 1.442695
        %v655 = vpow.pop %v654
        %v656 = vmul.f32 %v583, 1.442695
        %v657 = vpow.pop %v656
        %v658 = vmul.f32 %v584, 1.442695
        %v659 = vpow.pop %v658
        %v660 = vmul.f32 %v585, 1.442695
        %v661 = vpow.pop %v660
        %v662 = vmul.f32 %v586, 1.442695
        %v663 = vpow.pop %v662
        %v664 = vmul.f32 %v587, 1.442695
        %v665 = vpow.pop %v664
        %v666 = vmul.f32 %v588, 1.442695
        %v667 = vpow.pop %v666
        %v668 = vmul.f32 %v589, 1.442695
        %v669 = vpow.pop %v668
        %v670 = vmul.f32 %v590, 1.442695
        %v671 = vpow.pop %v670
        %v672 = vmul.f32 %v591, 1.442695
        %v673 = vpow.pop %v672
        %v674 = vmul.f32 %v592, 1.442695
        %v675 = vpow.pop %v674
        %v676 = vmul.f32 %v593, 1.442695
        %v677 = vpow.pop %v676
        %v678 = vmul.f32 %v594, 1.442695
        %v679 = vpow.pop %v678
        %v680 = vmul.f32 %v595, 1.442695
        %v681 = vpow.pop %v680
        %v682 = vmul.f32 %v596, 1.442695
        %v683 = vpow.pop %v682
        %v684 = vmul.f32 %v597, 1.442695
        %v685 = vpow.pop %v684
        %v686 = vmul.f32 %v598, 1.442695
        %v687 = vpow.pop %v686
        %v688 = vmul.f32 %v599, 1.442695
        %v689 = vpow.pop %v688
        %v690 = vmul.f32 %v600, 1.442695
        %v691 = vpow.pop %v690
        %v692 = vmul.f32 %v601, 1.442695
        %v693 = vpow.pop %v692
        %v694 = vmul.f32 %v602, 1.442695
        %v695 = vpow.pop %v694
        %v696 = vmul.f32 %v603, 1.442695
        %v697 = vpow.pop %v696
        %v698 = vmul.f32 %v604, 1.442695
        %v699 = vpow.pop %v698
        %v700 = vmul.f32 %v605, 1.442695
        %v701 = vpow.pop %v700
        %v702 = vmul.f32 %v606, 1.442695
        %v703 = vpow.pop %v702
        %v704 = vmul.f32 %v607, 1.442695
        %v705 = vpow.pop %v704
        %v706 = vmul.f32 %v608, 1.442695
        %v707 = vpow.pop %v706
        %v708 = vmul.f32 %v609, 1.442695
        %v709 = vpow.pop %v708
        %v710 = vmul.f32 %v610, 1.442695
        %v711 = vpow.pop %v710
        %v712 = vmul.f32 %v611, 1.442695
        %v713 = vpow.pop %v712
        %v714 = vmul.f32 %v612, 1.442695
        %v715 = vpow.pop %v714
        %v716 = vmul.f32 %v613, 1.442695
        %v717 = vpow.pop %v716
        %v718 = vmul.f32 %v614, 1.442695
        %v719 = vpow.pop %v718
        %v720 = vmul.f32 %v615, 1.442695
        %v721 = vpow.pop %v720
        %v722 = vmul.f32 %v616, 1.442695
        %v723 = vpow.pop %v722
        %v724 = vmul.f32 %v617, 1.442695
        %v725 = vpow.pop %v724
        %v726 = vmul.f32 %v618, 1.442695
        %v727 = vpow.pop %v726
        %v728 = vmul.f32 %v619, 1.442695
        %v729 = vpow.pop %v728
        %v730 = vmul.f32 %v620, 1.442695
        %v731 = vpow.pop %v730
        %v732 = vmul.f32 %v621, 1.442695
        %v733 = vpow.pop %v732
        %v734 = vmul.f32 %v622, 1.442695
        %v735 = vpow.pop %v734
        %v736 = vmul.f32 %v623, 1.442695
        %v737 = vpow.pop %v736
        %v738 = vmul.f32 %v624, 1.442695
        %v739 = vpow.pop %v738
        %v740 = vmul.f32 %v625, 1.442695
        %v741 = vpow.pop %v740
        %v742 = vmul.f32 %v626, 1.442695
        %v743 = vpow.pop %v742
        %v744 = vmul.f32 %v627, 1.442695
        %v745 = vpow.pop %v744
        %v746 = vmul.f32 %v628, 1.442695
        %v747 = vpow.pop %v746
        %v748 = vmul.f32 %v629, 1.442695
        %v749 = vpow.pop %v748
        %v750 = vmul.f32 %v630, 1.442695
        %v751 = vpow.pop %v750
        %v752 = vmul.f32 %v631, 1.442695
        %v753 = vpow.pop %v752
        %v754 = vmul.f32 %v632, 1.442695
        %v755 = vpow.pop %v754
        %v756 = vmul.f32 %v633, 1.442695
        %v757 = vpow.pop %v756
        %v758 = vmul.f32 %v634, 1.442695
        %v759 = vpow.pop %v758
        %v760 = vmul.f32 %v635, 1.442695
        %v761 = vpow.pop %v760
        %v762 = vmul.f32 %v636, 1.442695
        %v763 = vpow.pop %v762
        %v764 = vmul.f32 %v637, 1.442695
        %v765 = vpow.pop %v764
        %v766 = vsub.f32 %v350, %v498
        %v767 = vsub.f32 %v351, %v498
        %v768 = vsub.f32 %v352, %v498
        %v769 = vsub.f32 %v353, %v498
        %v770 = vsub.f32 %v354, %v503
        %v771 = vsub.f32 %v355, %v503
        %v772 = vsub.f32 %v356, %v503
        %v773 = vsub.f32 %v357, %v503
        %v774 = vsub.f32 %v358, %v508
        %v775 = vsub.f32 %v359, %v508
        %v776 = vsub.f32 %v360, %v508
        %v777 = vsub.f32 %v361, %v508
        %v778 = vsub.f32 %v362, %v513
        %v779 = vsub.f32 %v363, %v513
        %v780 = vsub.f32 %v364, %v513
        %v781 = vsub.f32 %v365, %v513
        %v782 = vsub.f32 %v366, %v518
        %v783 = vsub.f32 %v367, %v518
        %v784 = vsub.f32 %v368, %v518
        %v785 = vsub.f32 %v369, %v518
        %v786 = vsub.f32 %v370, %v523
        %v787 = vsub.f32 %v371, %v523
        %v788 = vsub.f32 %v372, %v523
        %v789 = vsub.f32 %v373, %v523
        %v790 = vsub.f32 %v374, %v528
        %v791 = vsub.f32 %v375, %v528
        %v792 = vsub.f32 %v376, %v528
        %v793 = vsub.f32 %v377, %v528
        %v794 = vsub.f32 %v378, %v533
        %v795 = vsub.f32 %v379, %v533
        %v796 = vsub.f32 %v380, %v533
        %v797 = vsub.f32 %v381, %v533
        %v798 = vsub.f32 %v382, %v538
        %v799 = vsub.f32 %v383, %v538
        %v800 = vsub.f32 %v384, %v538
        %v801 = vsub.f32 %v385, %v538
        %v802 = vsub.f32 %v386, %v543
        %v803 = vsub.f32 %v387, %v543
        %v804 = vsub.f32 %v388, %v543
        %v805 = vsub.f32 %v389, %v543
        %v806 = vsub.f32 %v390, %v548
        %v807 = vsub.f32 %v391, %v548
        %v808 = vsub.f32 %v392, %v548
        %v809 = vsub.f32 %v393, %v548
        %v810 = vsub.f32 %v394, %v553
        %v811 = vsub.f32 %v395, %v553
        %v812 = vsub.f32 %v396, %v553
        %v813 = vsub.f32 %v397, %v553
        %v814 = vsub.f32 %v398, %v558
        %v815 = vsub.f32 %v399, %v558
        %v816 = vsub.f32 %v400, %v558
        %v817 = vsub.f32 %v401, %v558
        %v818 = vsub.f32 %v402, %v563
        %v819 = vsub.f32 %v403, %v563
        %v820 = vsub.f32 %v404, %v563
        %v821 = vsub.f32 %v405, %v563
        %v822 = vsub.f32 %v406, %v568
        %v823 = vsub.f32 %v407, %v568
        %v824 = vsub.f32 %v408, %v568
        %v825 = vsub.f32 %v409, %v568
        %v826 = vsub.f32 %v410, %v573
        %v827 = vsub.f32 %v411, %v573
        %v828 = vsub.f32 %v412, %v573
        %v829 = vsub.f32 %v413, %v573
        %v830 = vmul.f32 %v766, 1.442695
        %v831 = vpow.pop %v830
        %v832 = vmul.f32 %v767, 1.442695
        %v833 = vpow.pop %v832
        %v834 = vmul.f32 %v768, 1.442695
        %v835 = vpow.pop %v834
        %v836 = vmul.f32 %v769, 1.442695
        %v837 = vpow.pop %v836
        %v838 = vmul.f32 %v770, 1.442695
        %v839 = vpow.pop %v838
        %v840 = vmul.f32 %v771, 1.442695
        %v841 = vpow.pop %v840
        %v842 = vmul.f32 %v772, 1.442695
        %v843 = vpow.pop %v842
        %v844 = vmul.f32 %v773, 1.442695
        %v845 = vpow.pop %v844
        %v846 = vmul.f32 %v774, 1.442695
        %v847 = vpow.pop %v846
        %v848 = vmul.f32 %v775, 1.442695
        %v849 = vpow.pop %v848
        %v850 = vmul.f32 %v776, 1.442695
        %v851 = vpow.pop %v850
        %v852 = vmul.f32 %v777, 1.442695
        %v853 = vpow.pop %v852
        %v854 = vmul.f32 %v778, 1.442695
        %v855 = vpow.pop %v854
        %v856 = vmul.f32 %v779, 1.442695
        %v857 = vpow.pop %v856
        %v858 = vmul.f32 %v780, 1.442695
        %v859 = vpow.pop %v858
        %v860 = vmul.f32 %v781, 1.442695
        %v861 = vpow.pop %v860
        %v862 = vmul.f32 %v782, 1.442695
        %v863 = vpow.pop %v862
        %v864 = vmul.f32 %v783, 1.442695
        %v865 = vpow.pop %v864
        %v866 = vmul.f32 %v784, 1.442695
        %v867 = vpow.pop %v866
        %v868 = vmul.f32 %v785, 1.442695
        %v869 = vpow.pop %v868
        %v870 = vmul.f32 %v786, 1.442695
        %v871 = vpow.pop %v870
        %v872 = vmul.f32 %v787, 1.442695
        %v873 = vpow.pop %v872
        %v874 = vmul.f32 %v788, 1.442695
        %v875 = vpow.pop %v874
        %v876 = vmul.f32 %v789, 1.442695
        %v877 = vpow.pop %v876
        %v878 = vmul.f32 %v790, 1.442695
        %v879 = vpow.pop %v878
        %v880 = vmul.f32 %v791, 1.442695
        %v881 = vpow.pop %v880
        %v882 = vmul.f32 %v792, 1.442695
        %v883 = vpow.pop %v882
        %v884 = vmul.f32 %v793, 1.442695
        %v885 = vpow.pop %v884
        %v886 = vmul.f32 %v794, 1.442695
        %v887 = vpow.pop %v886
        %v888 = vmul.f32 %v795, 1.442695
        %v889 = vpow.pop %v888
        %v890 = vmul.f32 %v796, 1.442695
        %v891 = vpow.pop %v890
        %v892 = vmul.f32 %v797, 1.442695
        %v893 = vpow.pop %v892
        %v894 = vmul.f32 %v798, 1.442695
        %v895 = vpow.pop %v894
        %v896 = vmul.f32 %v799, 1.442695
        %v897 = vpow.pop %v896
        %v898 = vmul.f32 %v800, 1.442695
        %v899 = vpow.pop %v898
        %v900 = vmul.f32 %v801, 1.442695
        %v901 = vpow.pop %v900
        %v902 = vmul.f32 %v802, 1.442695
        %v903 = vpow.pop %v902
        %v904 = vmul.f32 %v803, 1.442695
        %v905 = vpow.pop %v904
        %v906 = vmul.f32 %v804, 1.442695
        %v907 = vpow.pop %v906
        %v908 = vmul.f32 %v805, 1.442695
        %v909 = vpow.pop %v908
        %v910 = vmul.f32 %v806, 1.442695
        %v911 = vpow.pop %v910
        %v912 = vmul.f32 %v807, 1.442695
        %v913 = vpow.pop %v912
        %v914 = vmul.f32 %v808, 1.442695
        %v915 = vpow.pop %v914
        %v916 = vmul.f32 %v809, 1.442695
        %v917 = vpow.pop %v916
        %v918 = vmul.f32 %v810, 1.442695
        %v919 = vpow.pop %v918
        %v920 = vmul.f32 %v811, 1.442695
        %v921 = vpow.pop %v920
        %v922 = vmul.f32 %v812, 1.442695
        %v923 = vpow.pop %v922
        %v924 = vmul.f32 %v813, 1.442695
        %v925 = vpow.pop %v924
        %v926 = vmul.f32 %v814, 1.442695
        %v927 = vpow.pop %v926
        %v928 = vmul.f32 %v815, 1.442695
        %v929 = vpow.pop %v928
        %v930 = vmul.f32 %v816, 1.442695
        %v931 = vpow.pop %v930
        %v932 = vmul.f32 %v817, 1.442695
        %v933 = vpow.pop %v932
        %v934 = vmul.f32 %v818, 1.442695
        %v935 = vpow.pop %v934
        %v936 = vmul.f32 %v819, 1.442695
        %v937 = vpow.pop %v936
        %v938 = vmul.f32 %v820, 1.442695
        %v939 = vpow.pop %v938
        %v940 = vmul.f32 %v821, 1.442695
        %v941 = vpow.pop %v940
        %v942 = vmul.f32 %v822, 1.442695
        %v943 = vpow.pop %v942
        %v944 = vmul.f32 %v823, 1.442695
        %v945 = vpow.pop %v944
        %v946 = vmul.f32 %v824, 1.442695
        %v947 = vpow.pop %v946
        %v948 = vmul.f32 %v825, 1.442695
        %v949 = vpow.pop %v948
        %v950 = vmul.f32 %v826, 1.442695
        %v951 = vpow.pop %v950
        %v952 = vmul.f32 %v827, 1.442695
        %v953 = vpow.pop %v952
        %v954 = vmul.f32 %v828, 1.442695
        %v955 = vpow.pop %v954
        %v956 = vmul.f32 %v829, 1.442695
        %v957 = vpow.pop %v956
        %v958 = vadd.f32 %v639, %v641
        %v959 = vadd.f32 %v958, %v643
        %v960 = vadd.f32 %v959, %v645
        %961 = vadd.xlane.f32.xlu0 %v960
        %v962 = vpop.xlane.xlu0 %961
        %v963 = vadd.f32 %v647, %v649
        %v964 = vadd.f32 %v963, %v651
        %v965 = vadd.f32 %v964, %v653
        %966 = vadd.xlane.f32.xlu0 %v965
        %v967 = vpop.xlane.xlu0 %966
        %v968 = vadd.f32 %v655, %v657
        %v969 = vadd.f32 %v968, %v659
        %v970 = vadd.f32 %v969, %v661
        %971 = vadd.xlane.f32.xlu0 %v970
        %v972 = vpop.xlane.xlu0 %971
        %v973 = vadd.f32 %v663, %v665
        %v974 = vadd.f32 %v973, %v667
        %v975 = vadd.f32 %v974, %v669
        %976 = vadd.xlane.f32.xlu0 %v975
        %v977 = vpop.xlane.xlu0 %976
        %v978 = vadd.f32 %v671, %v673
        %v979 = vadd.f32 %v978, %v675
        %v980 = vadd.f32 %v979, %v677
        %981 = vadd.xlane.f32.xlu0 %v980
        %v982 = vpop.xlane.xlu0 %981
        %v983 = vadd.f32 %v679, %v681
        %v984 = vadd.f32 %v983, %v683
        %v985 = vadd.f32 %v984, %v685
        %986 = vadd.xlane.f32.xlu0 %v985
        %v987 = vpop.xlane.xlu0 %986
        %v988 = vadd.f32 %v687, %v689
        %v989 = vadd.f32 %v988, %v691
        %v990 = vadd.f32 %v989, %v693
        %991 = vadd.xlane.f32.xlu0 %v990
        %v992 = vpop.xlane.xlu0 %991
        %v993 = vadd.f32 %v695, %v697
        %v994 = vadd.f32 %v993, %v699
        %v995 = vadd.f32 %v994, %v701
        %996 = vadd.xlane.f32.xlu0 %v995
        %v997 = vpop.xlane.xlu0 %996
        %v998 = vadd.f32 %v703, %v705
        %v999 = vadd.f32 %v998, %v707
        %v1000 = vadd.f32 %v999, %v709
        %1001 = vadd.xlane.f32.xlu0 %v1000
        %v1002 = vpop.xlane.xlu0 %1001
        %v1003 = vadd.f32 %v711, %v713
        %v1004 = vadd.f32 %v1003, %v715
        %v1005 = vadd.f32 %v1004, %v717
        %1006 = vadd.xlane.f32.xlu0 %v1005
        %v1007 = vpop.xlane.xlu0 %1006
        %v1008 = vadd.f32 %v719, %v721
        %v1009 = vadd.f32 %v1008, %v723
        %v1010 = vadd.f32 %v1009, %v725
        %1011 = vadd.xlane.f32.xlu0 %v1010
        %v1012 = vpop.xlane.xlu0 %1011
        %v1013 = vadd.f32 %v727, %v729
        %v1014 = vadd.f32 %v1013, %v731
        %v1015 = vadd.f32 %v1014, %v733
        %1016 = vadd.xlane.f32.xlu0 %v1015
        %v1017 = vpop.xlane.xlu0 %1016
        %v1018 = vadd.f32 %v735, %v737
        %v1019 = vadd.f32 %v1018, %v739
        %v1020 = vadd.f32 %v1019, %v741
        %1021 = vadd.xlane.f32.xlu0 %v1020
        %v1022 = vpop.xlane.xlu0 %1021
        %v1023 = vadd.f32 %v743, %v745
        %v1024 = vadd.f32 %v1023, %v747
        %v1025 = vadd.f32 %v1024, %v749
        %1026 = vadd.xlane.f32.xlu0 %v1025
        %v1027 = vpop.xlane.xlu0 %1026
        %v1028 = vadd.f32 %v751, %v753
        %v1029 = vadd.f32 %v1028, %v755
        %v1030 = vadd.f32 %v1029, %v757
        %1031 = vadd.xlane.f32.xlu0 %v1030
        %v1032 = vpop.xlane.xlu0 %1031
        %v1033 = vadd.f32 %v759, %v761
        %v1034 = vadd.f32 %v1033, %v763
        %v1035 = vadd.f32 %v1034, %v765
        %1036 = vadd.xlane.f32.xlu0 %v1035
        %v1037 = vpop.xlane.xlu0 %1036
        %v1038 = vadd.f32 %v831, %v833
        %v1039 = vadd.f32 %v1038, %v835
        %v1040 = vadd.f32 %v1039, %v837
        %1041 = vadd.xlane.f32.xlu0 %v1040
        %v1042 = vpop.xlane.xlu0 %1041
        %v1043 = vadd.f32 %v839, %v841
        %v1044 = vadd.f32 %v1043, %v843
        %v1045 = vadd.f32 %v1044, %v845
        %1046 = vadd.xlane.f32.xlu0 %v1045
        %v1047 = vpop.xlane.xlu0 %1046
        %v1048 = vadd.f32 %v847, %v849
        %v1049 = vadd.f32 %v1048, %v851
        %v1050 = vadd.f32 %v1049, %v853
        %1051 = vadd.xlane.f32.xlu0 %v1050
        %v1052 = vpop.xlane.xlu0 %1051
        %v1053 = vadd.f32 %v855, %v857
        %v1054 = vadd.f32 %v1053, %v859
        %v1055 = vadd.f32 %v1054, %v861
        %1056 = vadd.xlane.f32.xlu0 %v1055
        %v1057 = vpop.xlane.xlu0 %1056
        %v1058 = vadd.f32 %v863, %v865
        %v1059 = vadd.f32 %v1058, %v867
        %v1060 = vadd.f32 %v1059, %v869
        %1061 = vadd.xlane.f32.xlu0 %v1060
        %v1062 = vpop.xlane.xlu0 %1061
        %v1063 = vadd.f32 %v871, %v873
        %v1064 = vadd.f32 %v1063, %v875
        %v1065 = vadd.f32 %v1064, %v877
        %1066 = vadd.xlane.f32.xlu0 %v1065
        %v1067 = vpop.xlane.xlu0 %1066
        %v1068 = vadd.f32 %v879, %v881
        %v1069 = vadd.f32 %v1068, %v883
        %v1070 = vadd.f32 %v1069, %v885
        %1071 = vadd.xlane.f32.xlu0 %v1070
        %v1072 = vpop.xlane.xlu0 %1071
        %v1073 = vadd.f32 %v887, %v889
        %v1074 = vadd.f32 %v1073, %v891
        %v1075 = vadd.f32 %v1074, %v893
        %1076 = vadd.xlane.f32.xlu0 %v1075
        %v1077 = vpop.xlane.xlu0 %1076
        %v1078 = vadd.f32 %v895, %v897
        %v1079 = vadd.f32 %v1078, %v899
        %v1080 = vadd.f32 %v1079, %v901
        %1081 = vadd.xlane.f32.xlu0 %v1080
        %v1082 = vpop.xlane.xlu0 %1081
        %v1083 = vadd.f32 %v903, %v905
        %v1084 = vadd.f32 %v1083, %v907
        %v1085 = vadd.f32 %v1084, %v909
        %1086 = vadd.xlane.f32.xlu0 %v1085
        %v1087 = vpop.xlane.xlu0 %1086
        %v1088 = vadd.f32 %v911, %v913
        %v1089 = vadd.f32 %v1088, %v915
        %v1090 = vadd.f32 %v1089, %v917
        %1091 = vadd.xlane.f32.xlu0 %v1090
        %v1092 = vpop.xlane.xlu0 %1091
        %v1093 = vadd.f32 %v919, %v921
        %v1094 = vadd.f32 %v1093, %v923
        %v1095 = vadd.f32 %v1094, %v925
        %1096 = vadd.xlane.f32.xlu0 %v1095
        %v1097 = vpop.xlane.xlu0 %1096
        %v1098 = vadd.f32 %v927, %v929
        %v1099 = vadd.f32 %v1098, %v931
        %v1100 = vadd.f32 %v1099, %v933
        %1101 = vadd.xlane.f32.xlu0 %v1100
        %v1102 = vpop.xlane.xlu0 %1101
        %v1103 = vadd.f32 %v935, %v937
        %v1104 = vadd.f32 %v1103, %v939
        %v1105 = vadd.f32 %v1104, %v941
        %1106 = vadd.xlane.f32.xlu0 %v1105
        %v1107 = vpop.xlane.xlu0 %1106
        %v1108 = vadd.f32 %v943, %v945
        %v1109 = vadd.f32 %v1108, %v947
        %v1110 = vadd.f32 %v1109, %v949
        %1111 = vadd.xlane.f32.xlu0 %v1110
        %v1112 = vpop.xlane.xlu0 %1111
        %v1113 = vadd.f32 %v951, %v953
        %v1114 = vadd.f32 %v1113, %v955
        %v1115 = vadd.f32 %v1114, %v957
        %1116 = vadd.xlane.f32.xlu0 %v1115
        %v1117 = vpop.xlane.xlu0 %1116
        %v1118 = vrcp.pop %v962
        %v1119 = vrcp.pop %v967
        %v1120 = vrcp.pop %v972
        %v1121 = vrcp.pop %v977
        %v1122 = vrcp.pop %v982
        %v1123 = vrcp.pop %v987
        %v1124 = vrcp.pop %v992
        %v1125 = vrcp.pop %v997
        %v1126 = vrcp.pop %v1002
        %v1127 = vrcp.pop %v1007
        %v1128 = vrcp.pop %v1012
        %v1129 = vrcp.pop %v1017
        %v1130 = vrcp.pop %v1022
        %v1131 = vrcp.pop %v1027
        %v1132 = vrcp.pop %v1032
        %v1133 = vrcp.pop %v1037
        %v1134 = vmul.f32 %v639, %v1118
        %v1135 = vmul.f32 %v641, %v1118
        %v1136 = vmul.f32 %v643, %v1118
        %v1137 = vmul.f32 %v645, %v1118
        %v1138 = vmul.f32 %v647, %v1119
        %v1139 = vmul.f32 %v649, %v1119
        %v1140 = vmul.f32 %v651, %v1119
        %v1141 = vmul.f32 %v653, %v1119
        %v1142 = vmul.f32 %v655, %v1120
        %v1143 = vmul.f32 %v657, %v1120
        %v1144 = vmul.f32 %v659, %v1120
        %v1145 = vmul.f32 %v661, %v1120
        %v1146 = vmul.f32 %v663, %v1121
        %v1147 = vmul.f32 %v665, %v1121
        %v1148 = vmul.f32 %v667, %v1121
        %v1149 = vmul.f32 %v669, %v1121
        %v1150 = vmul.f32 %v671, %v1122
        %v1151 = vmul.f32 %v673, %v1122
        %v1152 = vmul.f32 %v675, %v1122
        %v1153 = vmul.f32 %v677, %v1122
        %v1154 = vmul.f32 %v679, %v1123
        %v1155 = vmul.f32 %v681, %v1123
        %v1156 = vmul.f32 %v683, %v1123
        %v1157 = vmul.f32 %v685, %v1123
        %v1158 = vmul.f32 %v687, %v1124
        %v1159 = vmul.f32 %v689, %v1124
        %v1160 = vmul.f32 %v691, %v1124
        %v1161 = vmul.f32 %v693, %v1124
        %v1162 = vmul.f32 %v695, %v1125
        %v1163 = vmul.f32 %v697, %v1125
        %v1164 = vmul.f32 %v699, %v1125
        %v1165 = vmul.f32 %v701, %v1125
        %v1166 = vmul.f32 %v703, %v1126
        %v1167 = vmul.f32 %v705, %v1126
        %v1168 = vmul.f32 %v707, %v1126
        %v1169 = vmul.f32 %v709, %v1126
        %v1170 = vmul.f32 %v711, %v1127
        %v1171 = vmul.f32 %v713, %v1127
        %v1172 = vmul.f32 %v715, %v1127
        %v1173 = vmul.f32 %v717, %v1127
        %v1174 = vmul.f32 %v719, %v1128
        %v1175 = vmul.f32 %v721, %v1128
        %v1176 = vmul.f32 %v723, %v1128
        %v1177 = vmul.f32 %v725, %v1128
        %v1178 = vmul.f32 %v727, %v1129
        %v1179 = vmul.f32 %v729, %v1129
        %v1180 = vmul.f32 %v731, %v1129
        %v1181 = vmul.f32 %v733, %v1129
        %v1182 = vmul.f32 %v735, %v1130
        %v1183 = vmul.f32 %v737, %v1130
        %v1184 = vmul.f32 %v739, %v1130
        %v1185 = vmul.f32 %v741, %v1130
        %v1186 = vmul.f32 %v743, %v1131
        %v1187 = vmul.f32 %v745, %v1131
        %v1188 = vmul.f32 %v747, %v1131
        %v1189 = vmul.f32 %v749, %v1131
        %v1190 = vmul.f32 %v751, %v1132
        %v1191 = vmul.f32 %v753, %v1132
        %v1192 = vmul.f32 %v755, %v1132
        %v1193 = vmul.f32 %v757, %v1132
        %v1194 = vmul.f32 %v759, %v1133
        %v1195 = vmul.f32 %v761, %v1133
        %v1196 = vmul.f32 %v763, %v1133
        %v1197 = vmul.f32 %v765, %v1133
        %v1198 = vsub.f32 %v286, %v350
        %v1199 = vsub.f32 %v287, %v351
        %v1200 = vsub.f32 %v288, %v352
        %v1201 = vsub.f32 %v289, %v353
        %v1202 = vsub.f32 %v290, %v354
        %v1203 = vsub.f32 %v291, %v355
        %v1204 = vsub.f32 %v292, %v356
        %v1205 = vsub.f32 %v293, %v357
        %v1206 = vsub.f32 %v294, %v358
        %v1207 = vsub.f32 %v295, %v359
        %v1208 = vsub.f32 %v296, %v360
        %v1209 = vsub.f32 %v297, %v361
        %v1210 = vsub.f32 %v298, %v362
        %v1211 = vsub.f32 %v299, %v363
        %v1212 = vsub.f32 %v300, %v364
        %v1213 = vsub.f32 %v301, %v365
        %v1214 = vsub.f32 %v302, %v366
        %v1215 = vsub.f32 %v303, %v367
        %v1216 = vsub.f32 %v304, %v368
        %v1217 = vsub.f32 %v305, %v369
        %v1218 = vsub.f32 %v306, %v370
        %v1219 = vsub.f32 %v307, %v371
        %v1220 = vsub.f32 %v308, %v372
        %v1221 = vsub.f32 %v309, %v373
        %v1222 = vsub.f32 %v310, %v374
        %v1223 = vsub.f32 %v311, %v375
        %v1224 = vsub.f32 %v312, %v376
        %v1225 = vsub.f32 %v313, %v377
        %v1226 = vsub.f32 %v314, %v378
        %v1227 = vsub.f32 %v315, %v379
        %v1228 = vsub.f32 %v316, %v380
        %v1229 = vsub.f32 %v317, %v381
        %v1230 = vsub.f32 %v318, %v382
        %v1231 = vsub.f32 %v319, %v383
        %v1232 = vsub.f32 %v320, %v384
        %v1233 = vsub.f32 %v321, %v385
        %v1234 = vsub.f32 %v322, %v386
        %v1235 = vsub.f32 %v323, %v387
        %v1236 = vsub.f32 %v324, %v388
        %v1237 = vsub.f32 %v325, %v389
        %v1238 = vsub.f32 %v326, %v390
        %v1239 = vsub.f32 %v327, %v391
        %v1240 = vsub.f32 %v328, %v392
        %v1241 = vsub.f32 %v329, %v393
        %v1242 = vsub.f32 %v330, %v394
        %v1243 = vsub.f32 %v331, %v395
        %v1244 = vsub.f32 %v332, %v396
        %v1245 = vsub.f32 %v333, %v397
        %v1246 = vsub.f32 %v334, %v398
        %v1247 = vsub.f32 %v335, %v399
        %v1248 = vsub.f32 %v336, %v400
        %v1249 = vsub.f32 %v337, %v401
        %v1250 = vsub.f32 %v338, %v402
        %v1251 = vsub.f32 %v339, %v403
        %v1252 = vsub.f32 %v340, %v404
        %v1253 = vsub.f32 %v341, %v405
        %v1254 = vsub.f32 %v342, %v406
        %v1255 = vsub.f32 %v343, %v407
        %v1256 = vsub.f32 %v344, %v408
        %v1257 = vsub.f32 %v345, %v409
        %v1258 = vsub.f32 %v346, %v410
        %v1259 = vsub.f32 %v347, %v411
        %v1260 = vsub.f32 %v348, %v412
        %v1261 = vsub.f32 %v349, %v413
        %v1262 = vadd.f32 %v1198, %v1199
        %v1263 = vadd.f32 %v1262, %v1200
        %v1264 = vadd.f32 %v1263, %v1201
        %1265 = vadd.xlane.f32.xlu0 %v1264
        %v1266 = vpop.xlane.xlu0 %1265
        %v1267 = vadd.f32 %v1202, %v1203
        %v1268 = vadd.f32 %v1267, %v1204
        %v1269 = vadd.f32 %v1268, %v1205
        %1270 = vadd.xlane.f32.xlu0 %v1269
        %v1271 = vpop.xlane.xlu0 %1270
        %v1272 = vadd.f32 %v1206, %v1207
        %v1273 = vadd.f32 %v1272, %v1208
        %v1274 = vadd.f32 %v1273, %v1209
        %1275 = vadd.xlane.f32.xlu0 %v1274
        %v1276 = vpop.xlane.xlu0 %1275
        %v1277 = vadd.f32 %v1210, %v1211
        %v1278 = vadd.f32 %v1277, %v1212
        %v1279 = vadd.f32 %v1278, %v1213
        %1280 = vadd.xlane.f32.xlu0 %v1279
        %v1281 = vpop.xlane.xlu0 %1280
        %v1282 = vadd.f32 %v1214, %v1215
        %v1283 = vadd.f32 %v1282, %v1216
        %v1284 = vadd.f32 %v1283, %v1217
        %1285 = vadd.xlane.f32.xlu0 %v1284
        %v1286 = vpop.xlane.xlu0 %1285
        %v1287 = vadd.f32 %v1218, %v1219
        %v1288 = vadd.f32 %v1287, %v1220
        %v1289 = vadd.f32 %v1288, %v1221
        %1290 = vadd.xlane.f32.xlu0 %v1289
        %v1291 = vpop.xlane.xlu0 %1290
        %v1292 = vadd.f32 %v1222, %v1223
        %v1293 = vadd.f32 %v1292, %v1224
        %v1294 = vadd.f32 %v1293, %v1225
        %1295 = vadd.xlane.f32.xlu0 %v1294
        %v1296 = vpop.xlane.xlu0 %1295
        %v1297 = vadd.f32 %v1226, %v1227
        %v1298 = vadd.f32 %v1297, %v1228
        %v1299 = vadd.f32 %v1298, %v1229
        %1300 = vadd.xlane.f32.xlu0 %v1299
        %v1301 = vpop.xlane.xlu0 %1300
        %v1302 = vadd.f32 %v1230, %v1231
        %v1303 = vadd.f32 %v1302, %v1232
        %v1304 = vadd.f32 %v1303, %v1233
        %1305 = vadd.xlane.f32.xlu0 %v1304
        %v1306 = vpop.xlane.xlu0 %1305
        %v1307 = vadd.f32 %v1234, %v1235
        %v1308 = vadd.f32 %v1307, %v1236
        %v1309 = vadd.f32 %v1308, %v1237
        %1310 = vadd.xlane.f32.xlu0 %v1309
        %v1311 = vpop.xlane.xlu0 %1310
        %v1312 = vadd.f32 %v1238, %v1239
        %v1313 = vadd.f32 %v1312, %v1240
        %v1314 = vadd.f32 %v1313, %v1241
        %1315 = vadd.xlane.f32.xlu0 %v1314
        %v1316 = vpop.xlane.xlu0 %1315
        %v1317 = vadd.f32 %v1242, %v1243
        %v1318 = vadd.f32 %v1317, %v1244
        %v1319 = vadd.f32 %v1318, %v1245
        %1320 = vadd.xlane.f32.xlu0 %v1319
        %v1321 = vpop.xlane.xlu0 %1320
        %v1322 = vadd.f32 %v1246, %v1247
        %v1323 = vadd.f32 %v1322, %v1248
        %v1324 = vadd.f32 %v1323, %v1249
        %1325 = vadd.xlane.f32.xlu0 %v1324
        %v1326 = vpop.xlane.xlu0 %1325
        %v1327 = vadd.f32 %v1250, %v1251
        %v1328 = vadd.f32 %v1327, %v1252
        %v1329 = vadd.f32 %v1328, %v1253
        %1330 = vadd.xlane.f32.xlu0 %v1329
        %v1331 = vpop.xlane.xlu0 %1330
        %v1332 = vadd.f32 %v1254, %v1255
        %v1333 = vadd.f32 %v1332, %v1256
        %v1334 = vadd.f32 %v1333, %v1257
        %1335 = vadd.xlane.f32.xlu0 %v1334
        %v1336 = vpop.xlane.xlu0 %1335
        %v1337 = vadd.f32 %v1258, %v1259
        %v1338 = vadd.f32 %v1337, %v1260
        %v1339 = vadd.f32 %v1338, %v1261
        %1340 = vadd.xlane.f32.xlu0 %v1339
        %v1341 = vpop.xlane.xlu0 %1340
        %v1342 = vsub.f32 %v418, %v498
        %v1343 = vsub.f32 %v423, %v503
        %v1344 = vsub.f32 %v428, %v508
        %v1345 = vsub.f32 %v433, %v513
        %v1346 = vsub.f32 %v438, %v518
        %v1347 = vsub.f32 %v443, %v523
        %v1348 = vsub.f32 %v448, %v528
        %v1349 = vsub.f32 %v453, %v533
        %v1350 = vsub.f32 %v458, %v538
        %v1351 = vsub.f32 %v463, %v543
        %v1352 = vsub.f32 %v468, %v548
        %v1353 = vsub.f32 %v473, %v553
        %v1354 = vsub.f32 %v478, %v558
        %v1355 = vsub.f32 %v483, %v563
        %v1356 = vsub.f32 %v488, %v568
        %v1357 = vsub.f32 %v493, %v573
        %v1358 = vmul.f32 %v1342, 512.0
        %v1359 = vmul.f32 %v1343, 512.0
        %v1360 = vmul.f32 %v1344, 512.0
        %v1361 = vmul.f32 %v1345, 512.0
        %v1362 = vmul.f32 %v1346, 512.0
        %v1363 = vmul.f32 %v1347, 512.0
        %v1364 = vmul.f32 %v1348, 512.0
        %v1365 = vmul.f32 %v1349, 512.0
        %v1366 = vmul.f32 %v1350, 512.0
        %v1367 = vmul.f32 %v1351, 512.0
        %v1368 = vmul.f32 %v1352, 512.0
        %v1369 = vmul.f32 %v1353, 512.0
        %v1370 = vmul.f32 %v1354, 512.0
        %v1371 = vmul.f32 %v1355, 512.0
        %v1372 = vmul.f32 %v1356, 512.0
        %v1373 = vmul.f32 %v1357, 512.0
        %v1374 = vsub.f32 %v1266, %v1358
        %v1375 = vsub.f32 %v1271, %v1359
        %v1376 = vsub.f32 %v1276, %v1360
        %v1377 = vsub.f32 %v1281, %v1361
        %v1378 = vsub.f32 %v1286, %v1362
        %v1379 = vsub.f32 %v1291, %v1363
        %v1380 = vsub.f32 %v1296, %v1364
        %v1381 = vsub.f32 %v1301, %v1365
        %v1382 = vsub.f32 %v1306, %v1366
        %v1383 = vsub.f32 %v1311, %v1367
        %v1384 = vsub.f32 %v1316, %v1368
        %v1385 = vsub.f32 %v1321, %v1369
        %v1386 = vsub.f32 %v1326, %v1370
        %v1387 = vsub.f32 %v1331, %v1371
        %v1388 = vsub.f32 %v1336, %v1372
        %v1389 = vsub.f32 %v1341, %v1373
        %v1390 = vlog2.pop %v1042
        %v1391 = vmul.f32 %v1390, 0.6931472
        %v1392 = vlog2.pop %v1047
        %v1393 = vmul.f32 %v1392, 0.6931472
        %v1394 = vlog2.pop %v1052
        %v1395 = vmul.f32 %v1394, 0.6931472
        %v1396 = vlog2.pop %v1057
        %v1397 = vmul.f32 %v1396, 0.6931472
        %v1398 = vlog2.pop %v1062
        %v1399 = vmul.f32 %v1398, 0.6931472
        %v1400 = vlog2.pop %v1067
        %v1401 = vmul.f32 %v1400, 0.6931472
        %v1402 = vlog2.pop %v1072
        %v1403 = vmul.f32 %v1402, 0.6931472
        %v1404 = vlog2.pop %v1077
        %v1405 = vmul.f32 %v1404, 0.6931472
        %v1406 = vlog2.pop %v1082
        %v1407 = vmul.f32 %v1406, 0.6931472
        %v1408 = vlog2.pop %v1087
        %v1409 = vmul.f32 %v1408, 0.6931472
        %v1410 = vlog2.pop %v1092
        %v1411 = vmul.f32 %v1410, 0.6931472
        %v1412 = vlog2.pop %v1097
        %v1413 = vmul.f32 %v1412, 0.6931472
        %v1414 = vlog2.pop %v1102
        %v1415 = vmul.f32 %v1414, 0.6931472
        %v1416 = vlog2.pop %v1107
        %v1417 = vmul.f32 %v1416, 0.6931472
        %v1418 = vlog2.pop %v1112
        %v1419 = vmul.f32 %v1418, 0.6931472
        %v1420 = vlog2.pop %v1117
        %v1421 = vmul.f32 %v1420, 0.6931472
        %v1422 = vlog2.pop %v962
        %v1423 = vmul.f32 %v1422, 0.6931472
        %v1424 = vlog2.pop %v967
        %v1425 = vmul.f32 %v1424, 0.6931472
        %v1426 = vlog2.pop %v972
        %v1427 = vmul.f32 %v1426, 0.6931472
        %v1428 = vlog2.pop %v977
        %v1429 = vmul.f32 %v1428, 0.6931472
        %v1430 = vlog2.pop %v982
        %v1431 = vmul.f32 %v1430, 0.6931472
        %v1432 = vlog2.pop %v987
        %v1433 = vmul.f32 %v1432, 0.6931472
        %v1434 = vlog2.pop %v992
        %v1435 = vmul.f32 %v1434, 0.6931472
        %v1436 = vlog2.pop %v997
        %v1437 = vmul.f32 %v1436, 0.6931472
        %v1438 = vlog2.pop %v1002
        %v1439 = vmul.f32 %v1438, 0.6931472
        %v1440 = vlog2.pop %v1007
        %v1441 = vmul.f32 %v1440, 0.6931472
        %v1442 = vlog2.pop %v1012
        %v1443 = vmul.f32 %v1442, 0.6931472
        %v1444 = vlog2.pop %v1017
        %v1445 = vmul.f32 %v1444, 0.6931472
        %v1446 = vlog2.pop %v1022
        %v1447 = vmul.f32 %v1446, 0.6931472
        %v1448 = vlog2.pop %v1027
        %v1449 = vmul.f32 %v1448, 0.6931472
        %v1450 = vlog2.pop %v1032
        %v1451 = vmul.f32 %v1450, 0.6931472
        %v1452 = vlog2.pop %v1037
        %v1453 = vmul.f32 %v1452, 0.6931472
        %v1454 = vsub.f32 %v1391, %v1423
        %v1455 = vsub.f32 %v1393, %v1425
        %v1456 = vsub.f32 %v1395, %v1427
        %v1457 = vsub.f32 %v1397, %v1429
        %v1458 = vsub.f32 %v1399, %v1431
        %v1459 = vsub.f32 %v1401, %v1433
        %v1460 = vsub.f32 %v1403, %v1435
        %v1461 = vsub.f32 %v1405, %v1437
        %v1462 = vsub.f32 %v1407, %v1439
        %v1463 = vsub.f32 %v1409, %v1441
        %v1464 = vsub.f32 %v1411, %v1443
        %v1465 = vsub.f32 %v1413, %v1445
        %v1466 = vsub.f32 %v1415, %v1447
        %v1467 = vsub.f32 %v1417, %v1449
        %v1468 = vsub.f32 %v1419, %v1451
        %v1469 = vsub.f32 %v1421, %v1453
        %v1470 = vmul.f32 %v1454, 512.0
        %v1471 = vmul.f32 %v1455, 512.0
        %v1472 = vmul.f32 %v1456, 512.0
        %v1473 = vmul.f32 %v1457, 512.0
        %v1474 = vmul.f32 %v1458, 512.0
        %v1475 = vmul.f32 %v1459, 512.0
        %v1476 = vmul.f32 %v1460, 512.0
        %v1477 = vmul.f32 %v1461, 512.0
        %v1478 = vmul.f32 %v1462, 512.0
        %v1479 = vmul.f32 %v1463, 512.0
        %v1480 = vmul.f32 %v1464, 512.0
        %v1481 = vmul.f32 %v1465, 512.0
        %v1482 = vmul.f32 %v1466, 512.0
        %v1483 = vmul.f32 %v1467, 512.0
        %v1484 = vmul.f32 %v1468, 512.0
        %v1485 = vmul.f32 %v1469, 512.0
        %v1486 = vadd.f32 %v1374, %v1470
        %v1487 = vadd.f32 %v1375, %v1471
        %v1488 = vadd.f32 %v1376, %v1472
        %v1489 = vadd.f32 %v1377, %v1473
        %v1490 = vadd.f32 %v1378, %v1474
        %v1491 = vadd.f32 %v1379, %v1475
        %v1492 = vadd.f32 %v1380, %v1476
        %v1493 = vadd.f32 %v1381, %v1477
        %v1494 = vadd.f32 %v1382, %v1478
        %v1495 = vadd.f32 %v1383, %v1479
        %v1496 = vadd.f32 %v1384, %v1480
        %v1497 = vadd.f32 %v1385, %v1481
        %v1498 = vadd.f32 %v1386, %v1482
        %v1499 = vadd.f32 %v1387, %v1483
        %v1500 = vadd.f32 %v1388, %v1484
        %v1501 = vadd.f32 %v1389, %v1485
        %v1502 = vld [vmem:[%s262] sm:$0xf]
        %v1503 = vadd.f32 %v1134, %v1138
        %v1504 = vadd.f32 %v1503, %v1142
        %v1505 = vadd.f32 %v1504, %v1146
        %v1506 = vadd.f32 %v1505, %v1150
        %v1507 = vadd.f32 %v1506, %v1154
        %v1508 = vadd.f32 %v1507, %v1158
        %v1509 = vadd.f32 %v1508, %v1162
        %v1510 = vadd.f32 %v1509, %v1166
        %v1511 = vadd.f32 %v1510, %v1170
        %v1512 = vadd.f32 %v1511, %v1174
        %v1513 = vadd.f32 %v1512, %v1178
        %v1514 = vadd.f32 %v1513, %v1182
        %v1515 = vadd.f32 %v1514, %v1186
        %v1516 = vadd.f32 %v1515, %v1190
        %v1517 = vadd.f32 %v1516, %v1194
        %v1518 = vrot.slane %v1517, 4
        %v1519 = vadd.f32 %v1517, %v1518
        %v1520 = vrot.slane %v1519, 2
        %v1521 = vadd.f32 %v1519, %v1520
        %v1522 = vrot.slane %v1521, 1
        %v1523 = vadd.f32 %v1521, %v1522
        %v1524 = vadd.f32 %v1135, %v1139
        %v1525 = vadd.f32 %v1524, %v1143
        %v1526 = vadd.f32 %v1525, %v1147
        %v1527 = vadd.f32 %v1526, %v1151
        %v1528 = vadd.f32 %v1527, %v1155
        %v1529 = vadd.f32 %v1528, %v1159
        %v1530 = vadd.f32 %v1529, %v1163
        %v1531 = vadd.f32 %v1530, %v1167
        %v1532 = vadd.f32 %v1531, %v1171
        %v1533 = vadd.f32 %v1532, %v1175
        %v1534 = vadd.f32 %v1533, %v1179
        %v1535 = vadd.f32 %v1534, %v1183
        %v1536 = vadd.f32 %v1535, %v1187
        %v1537 = vadd.f32 %v1536, %v1191
        %v1538 = vadd.f32 %v1537, %v1195
        %v1539 = vrot.slane %v1538, 4
        %v1540 = vadd.f32 %v1538, %v1539
        %v1541 = vrot.slane %v1540, 2
        %v1542 = vadd.f32 %v1540, %v1541
        %v1543 = vrot.slane %v1542, 1
        %v1544 = vadd.f32 %v1542, %v1543
        %v1545 = vadd.f32 %v1136, %v1140
        %v1546 = vadd.f32 %v1545, %v1144
        %v1547 = vadd.f32 %v1546, %v1148
        %v1548 = vadd.f32 %v1547, %v1152
        %v1549 = vadd.f32 %v1548, %v1156
        %v1550 = vadd.f32 %v1549, %v1160
        %v1551 = vadd.f32 %v1550, %v1164
        %v1552 = vadd.f32 %v1551, %v1168
        %v1553 = vadd.f32 %v1552, %v1172
        %v1554 = vadd.f32 %v1553, %v1176
        %v1555 = vadd.f32 %v1554, %v1180
        %v1556 = vadd.f32 %v1555, %v1184
        %v1557 = vadd.f32 %v1556, %v1188
        %v1558 = vadd.f32 %v1557, %v1192
        %v1559 = vadd.f32 %v1558, %v1196
        %v1560 = vrot.slane %v1559, 4
        %v1561 = vadd.f32 %v1559, %v1560
        %v1562 = vrot.slane %v1561, 2
        %v1563 = vadd.f32 %v1561, %v1562
        %v1564 = vrot.slane %v1563, 1
        %v1565 = vadd.f32 %v1563, %v1564
        %v1566 = vadd.f32 %v1137, %v1141
        %v1567 = vadd.f32 %v1566, %v1145
        %v1568 = vadd.f32 %v1567, %v1149
        %v1569 = vadd.f32 %v1568, %v1153
        %v1570 = vadd.f32 %v1569, %v1157
        %v1571 = vadd.f32 %v1570, %v1161
        %v1572 = vadd.f32 %v1571, %v1165
        %v1573 = vadd.f32 %v1572, %v1169
        %v1574 = vadd.f32 %v1573, %v1173
        %v1575 = vadd.f32 %v1574, %v1177
        %v1576 = vadd.f32 %v1575, %v1181
        %v1577 = vadd.f32 %v1576, %v1185
        %v1578 = vadd.f32 %v1577, %v1189
        %v1579 = vadd.f32 %v1578, %v1193
        %v1580 = vadd.f32 %v1579, %v1197
        %v1581 = vrot.slane %v1580, 4
        %v1582 = vadd.f32 %v1580, %v1581
        %v1583 = vrot.slane %v1582, 2
        %v1584 = vadd.f32 %v1582, %v1583
        %v1585 = vrot.slane %v1584, 1
        %v1586 = vadd.f32 %v1584, %v1585
        %v1591 = vcombine.low %v1523, %v1544
        %v1592 = vcombine.low %v1565, %v1586
        %v1594 = vunpack.c.l.s4 1966171168
        %v1595 = vunpack.c.0.s8 %v1594
        %v1596 = vlaneseq
        %v1597 = vshrl.u32 %v1596, 7
        %v1598 = vsub.s32 %v1595, %v1597
        %v1599 = vrot.slane %v1591, %v1598
        %v1601 = vunpack.c.l.s4 1966171168
        %v1602 = vunpack.c.0.s8 %v1601
        %v1603 = vlaneseq
        %v1604 = vshrl.u32 %v1603, 7
        %v1605 = vsub.s32 %v1602, %v1604
        %v1606 = vrot.slane %v1592, %v1605
        %v1607 = vcombine.low %v1599, %v1606
        %v1609 = vunpack.c.l.s4 1966171168
        %v1610 = vunpack.c.0.s8 %v1609
        %v1611 = vlaneseq
        %v1612 = vshrl.u32 %v1611, 7
        %v1613 = vsub.s32 %v1610, %v1612
        %v1614 = vrot.slane %v1607, %v1613
        %v1616 = vadd.f32 %v1502, %v1614
        %v1617 = vlaneseq
        %vm1618 = vcmp.ge.s32.totalorder %v1617, 0
        %vm1619 = vcmp.lt.s32.totalorder %v1617, 512
        %vm1620 = vmand %vm1618, %vm1619
        %1621 = vst.msk [vmem:[%s262] sm:$0xf] %vm1620, %v1616
        %v1638 = vlaneseq
        %v1639 = vand.u32 %v1638, 127
        %v1640 = vlaneseq
        %v1641 = vshrl.u32 %v1640, 7
        %v1642 = vsub.s32 %v1639, %v1641
        %v1643 = vrot.slane %v1486, %v1642
        %v1644 = vadd.s32 %v1639, 4294967288
        %v1645 = vlaneseq
        %v1646 = vshrl.u32 %v1645, 7
        %v1647 = vsub.s32 %v1644, %v1646
        %v1648 = vrot.slane %v1487, %v1647
        %vm1649 = vcmask 130112
        %v1650 = vsel %vm1649, %v1648, %v1643
        %v1651 = vadd.s32 %v1639, 4294967280
        %v1652 = vlaneseq
        %v1653 = vshrl.u32 %v1652, 7
        %v1654 = vsub.s32 %v1651, %v1653
        %v1655 = vrot.slane %v1488, %v1654
        %vm1656 = vcmask 195712
        %v1657 = vsel %vm1656, %v1655, %v1650
        %v1658 = vadd.s32 %v1639, 4294967272
        %v1659 = vlaneseq
        %v1660 = vshrl.u32 %v1659, 7
        %v1661 = vsub.s32 %v1658, %v1660
        %v1662 = vrot.slane %v1489, %v1661
        %vm1663 = vcmask 261312
        %v1664 = vsel %vm1663, %v1662, %v1657
        %v1665 = vadd.s32 %v1639, 4294967264
        %v1666 = vlaneseq
        %v1667 = vshrl.u32 %v1666, 7
        %v1668 = vsub.s32 %v1665, %v1667
        %v1669 = vrot.slane %v1490, %v1668
        %vm1670 = vcmask 326912
        %v1671 = vsel %vm1670, %v1669, %v1664
        %v1672 = vadd.s32 %v1639, 4294967256
        %v1673 = vlaneseq
        %v1674 = vshrl.u32 %v1673, 7
        %v1675 = vsub.s32 %v1672, %v1674
        %v1676 = vrot.slane %v1491, %v1675
        %vm1677 = vcmask 392512
        %v1678 = vsel %vm1677, %v1676, %v1671
        %v1679 = vadd.s32 %v1639, 4294967248
        %v1680 = vlaneseq
        %v1681 = vshrl.u32 %v1680, 7
        %v1682 = vsub.s32 %v1679, %v1681
        %v1683 = vrot.slane %v1492, %v1682
        %vm1684 = vcmask 458112
        %v1685 = vsel %vm1684, %v1683, %v1678
        %v1686 = vadd.s32 %v1639, 4294967240
        %v1687 = vlaneseq
        %v1688 = vshrl.u32 %v1687, 7
        %v1689 = vsub.s32 %v1686, %v1688
        %v1690 = vrot.slane %v1493, %v1689
        %vm1691 = vcmask 523712
        %v1692 = vsel %vm1691, %v1690, %v1685
        %v1693 = vadd.s32 %v1639, 4294967232
        %v1694 = vlaneseq
        %v1695 = vshrl.u32 %v1694, 7
        %v1696 = vsub.s32 %v1693, %v1695
        %v1697 = vrot.slane %v1494, %v1696
        %vm1698 = vcmask 589312
        %v1699 = vsel %vm1698, %v1697, %v1692
        %v1700 = vadd.s32 %v1639, 4294967224
        %v1701 = vlaneseq
        %v1702 = vshrl.u32 %v1701, 7
        %v1703 = vsub.s32 %v1700, %v1702
        %v1704 = vrot.slane %v1495, %v1703
        %vm1705 = vcmask 654912
        %v1706 = vsel %vm1705, %v1704, %v1699
        %v1707 = vadd.s32 %v1639, 4294967216
        %v1708 = vlaneseq
        %v1709 = vshrl.u32 %v1708, 7
        %v1710 = vsub.s32 %v1707, %v1709
        %v1711 = vrot.slane %v1496, %v1710
        %vm1712 = vcmask 720512
        %v1713 = vsel %vm1712, %v1711, %v1706
        %v1714 = vadd.s32 %v1639, 4294967208
        %v1715 = vlaneseq
        %v1716 = vshrl.u32 %v1715, 7
        %v1717 = vsub.s32 %v1714, %v1716
        %v1718 = vrot.slane %v1497, %v1717
        %vm1719 = vcmask 786112
        %v1720 = vsel %vm1719, %v1718, %v1713
        %v1721 = vadd.s32 %v1639, 4294967200
        %v1722 = vlaneseq
        %v1723 = vshrl.u32 %v1722, 7
        %v1724 = vsub.s32 %v1721, %v1723
        %v1725 = vrot.slane %v1498, %v1724
        %vm1726 = vcmask 851712
        %v1727 = vsel %vm1726, %v1725, %v1720
        %v1728 = vadd.s32 %v1639, 4294967192
        %v1729 = vlaneseq
        %v1730 = vshrl.u32 %v1729, 7
        %v1731 = vsub.s32 %v1728, %v1730
        %v1732 = vrot.slane %v1499, %v1731
        %vm1733 = vcmask 917312
        %v1734 = vsel %vm1733, %v1732, %v1727
        %v1735 = vadd.s32 %v1639, 4294967184
        %v1736 = vlaneseq
        %v1737 = vshrl.u32 %v1736, 7
        %v1738 = vsub.s32 %v1735, %v1737
        %v1739 = vrot.slane %v1500, %v1738
        %vm1740 = vcmask 982912
        %v1741 = vsel %vm1740, %v1739, %v1734
        %v1742 = vadd.s32 %v1639, 4294967176
        %v1743 = vlaneseq
        %v1744 = vshrl.u32 %v1743, 7
        %v1745 = vsub.s32 %v1742, %v1744
        %v1746 = vrot.slane %v1501, %v1745
        %vm1747 = vcmask 1048512
        %v1748 = vsel %vm1747, %v1746, %v1741
        %1750 = vst [vmem:[%s268] sm:$0x1] %v1748
        %s1751 = sand.u32 %s107, 1
        %s1752 = scalar_lea.sflag [#allocation4], %s1751
        %s1753 = sand.u32 %s107, 1
        %s1754 = smul.addr %s1753, 4
        %s1755 = scalar_lea.vmem [#allocation7], %s1754
        %s1756 = sand.u32 %s137, 1
        %s1757 = scalar_lea.sflag [#allocation9], %s1756
        %s1758 = sand.u32 %s137, 1
        %s1759 = scalar_lea.vmem [#allocation8], %s1758
        // Predicated region
        $region41: #{tpu_custom_call.1} parent=27 // pred_check
          %p1760 = pneg %p117
        $region42: #{tpu_custom_call.1} parent=27 // pred_check_branch
          %1762 = sbr.rel (%p1760) target = $region44
        $region43: #{tpu_custom_call.1} parent=27 // pred_region
          %s1764 = ssub.s32 64, 64
          %1765 = vsyncadd %s1752, %s1764
          %s1766 = smul.addr %s31, 4
          %s1767 = smul.addr %s1766, 16
          %s1768 = scalar_lea.hbm %s2, %s1767
          %s1770 = sshll.u32 %s1755, 4
          %s1771 = int_to_ptr.vmem [resolvable:$true] %s1770
          %1773 = dma.vmem_to_hbm [thread:$0]  %s1771, 64, %s1768, %s1752
        $region44: #{tpu_custom_call.1} parent=27 // pred_fallthru
          _
        // Predicated region
        $region45: #{tpu_custom_call.1} parent=27 // pred_check
          %p1774 = pneg %p147
        $region46: #{tpu_custom_call.1} parent=27 // pred_check_branch
          %1776 = sbr.rel (%p1774) target = $region48
        $region47: #{tpu_custom_call.1} parent=27 // pred_region
          %s1777 = smul.u32 %s31, 2
          %s1778 = sadd.s32 %s1777, %s32
          %s1780 = ssub.s32 16, 16
          %1781 = vsyncadd %s1757, %s1780
          %s1782 = smul.addr %s1778, 16
          %s1783 = scalar_lea.hbm %s3, %s1782
          %s1785 = sshll.u32 %s1759, 4
          %s1786 = int_to_ptr.vmem [resolvable:$true] %s1785
          %1788 = dma.vmem_to_hbm [thread:$0]  %s1786, 16, %s1783, %s1757
        $region48: #{tpu_custom_call.1} parent=27 // pred_fallthru
          _
      $region28: #{tpu_custom_call.1} parent=5 // pred_fallthru
        _
      %p1789 = scmp.le.s32.totalorder 2, %s22
      // Predicated region
      $region49: #{tpu_custom_call.1} parent=5 // pred_check
        %p1790 = pneg %p1789
      $region50: #{tpu_custom_call.1} parent=5 // pred_check_branch
        %1792 = sbr.rel (%p1790) target = $region52
      $region51: #{tpu_custom_call.1} parent=5 // pred_region
        %s1793 = ssub.s32 %s22, 2
        // Predicated region
        $region53: #{tpu_custom_call.1} parent=51 // pred_check
          %p1794 = pneg %p123
        $region54: #{tpu_custom_call.1} parent=51 // pred_check_branch
          %1796 = sbr.rel (%p1794) target = $region56
        $region55: #{tpu_custom_call.1} parent=51 // pred_region
          %s1797 = sand.u32 %s108, 1
          %s1798 = scalar_lea.sflag [#allocation4], %s1797
          %s1799 = sand.u32 %s108, 1
          %s1800 = smul.addr %s1799, 4
          %s1801 = scalar_lea.vmem [#allocation7], %s1800
          %1802 = dma.done %s1798, 64
        $region56: #{tpu_custom_call.1} parent=51 // pred_fallthru
          _
        // Predicated region
        $region57: #{tpu_custom_call.1} parent=51 // pred_check
          %p1803 = pneg %p153
        $region58: #{tpu_custom_call.1} parent=51 // pred_check_branch
          %1805 = sbr.rel (%p1803) target = $region60
        $region59: #{tpu_custom_call.1} parent=51 // pred_region
          %s1806 = sand.u32 %s138, 1
          %s1807 = scalar_lea.sflag [#allocation9], %s1806
          %s1808 = sand.u32 %s138, 1
          %s1809 = scalar_lea.vmem [#allocation8], %s1808
          %1810 = dma.done %s1807, 16
        $region60: #{tpu_custom_call.1} parent=51 // pred_fallthru
          _
      $region52: #{tpu_custom_call.1} parent=5 // pred_fallthru
        _
    $region6: #{tpu_custom_call.1} parent=1 // loop_footer
      %s26 = sadd.s32 1, %s22
    $region7: #{tpu_custom_call.1} parent=1 // loop_footer_branch
      %21 = sbr.rel target = $region3
    $region8: #{tpu_custom_call.1} parent=1 // loop_exit
      _
    %1811 = vsyncpa [#allocation3], 1
    %s1812 = scalar_lea.sflag [#allocation3], 1
    %1813 = vsyncpa %s1812, 1
    %1814 = vsyncpa [#allocation6], 1
    %s1815 = scalar_lea.sflag [#allocation6], 1
    %1816 = vsyncpa %s1815, 1
    %1817 = vsyncpa [#allocation4], 1
    %s1818 = scalar_lea.sflag [#allocation4], 1
    %1819 = vsyncpa %s1818, 1
    %1820 = vsyncpa [#allocation9], 1
    %s1821 = scalar_lea.sflag [#allocation9], 1
    %1822 = vsyncpa %s1821, 1

</llo_original>
